<compile_context>
chip_gen: v6e
topology: v6e:2x2x1
jax: 0.10.0
libtpu: 0.0.40
codegen_flags: <defaults>
</compile_context>

<pallas_src>
import functools

import numpy as np
import jax
import jax.numpy as jnp
from jax import lax
from jax.experimental import pallas as pl
from jax.experimental.pallas import tpu as pltpu


_LANE = 128                            # TPU lane width; feature dim padded to this
_VMEM_LIMIT = 48 * 1024 * 1024         # scoped-VMEM budget, safe on v7x's 64 MiB physical
_VMEM_SOFT_CAP = 44 * 1024 * 1024      # leave headroom below the scoped limit

# murmur3 fmix32 constants, written in int32 two's-complement form.
_GOLDEN = np.int32(-1640531527)        # 0x9E3779B9
_MIX1 = np.int32(-2048144789)          # 0x85EBCA6B
_MIX2 = np.int32(-1028477387)          # 0xC2B2AE35


def _round_up(x, m):
    return ((x + m - 1) // m) * m


def _choose_tile(n):
    """Row/col tile: as large as possible without excessive zero-padding."""
    n = int(n)
    if n >= 8192:
        return 1024
    if n >= 2048:
        return 512
    base = _round_up(max(n, 1), 256)
    if base % 1024 == 0:
        return 1024
    if base % 512 == 0:
        return 512
    return 256


def _vmem_estimate(tm_u, tm_i, mi, dp):
    """Conservative (2 buffers per operand) VMEM footprint of one fused-hop call."""
    a_tile = 2 * tm_u * tm_i * 2              # bf16 adjacency tile, double-buffered
    e_items = 2 * mi * dp * 2                 # resident item-embedding slab (bf16)
    e_users = 2 * tm_u * dp * 2               # user-embedding row tile (bf16)
    o_users = 2 * tm_u * dp * 4               # f32 user output tile
    o_items = 2 * mi * dp * 4                 # f32 resident item output slab
    return a_tile + e_items + e_users + o_users + o_items


def _hash_bits(h, seed):
    """murmur3-style finalizer over int32 `h` mixed with the per-hop seed."""
    h = h * _GOLDEN + seed
    h = h ^ lax.shift_right_logical(h, jnp.int32(16))
    h = h * _MIX1
    h = h ^ lax.shift_right_logical(h, jnp.int32(13))
    h = h * _MIX2
    h = h ^ lax.shift_right_logical(h, jnp.int32(16))
    return h


# ----------------------------------------------------------------------------
# Fused per-hop kernel: one (user-row-tile, item-col-tile) step computes both
#   o_users[gi] += dropout_u(R[gi, gj]) @ E_items[gj]
#   o_items[gj] += dropout_i(R[gi, gj])^T @ E_users[gi]
# so each adjacency tile is read from HBM exactly once per hop.
# ----------------------------------------------------------------------------
def _fused_hop_kernel(seed_ref, a_ref, e_items_ref, e_users_ref,
                      o_users_ref, o_items_ref, *,
                      tm_i, n_cols_pad, edge_dropout_rate, apply_edge_dropout):
    gi = pl.program_id(0)
    gj = pl.program_id(1)
    ni = pl.num_programs(0)
    nj = pl.num_programs(1)

    # Item output is resident for the whole grid (constant block index): zero once.
    @pl.when(jnp.logical_and(gi == 0, gj == 0))
    def _init_items():
        o_items_ref[...] = jnp.zeros_like(o_items_ref)

    # User output tile is resident across the inner (gj) reduction: zero per row tile.
    @pl.when(gj == 0)
    def _init_users():
        o_users_ref[...] = jnp.zeros_like(o_users_ref)

    a = a_ref[...]                                    # (tm_u, tm_i) bf16 adjacency tile

    if apply_edge_dropout:
        # Replicates _sparse_dropout verbatim: keep iff floor(rate + U) == 1, i.e.
        # U >= 1 - rate (keep prob == rate), then rescale by 1/(1 - rate).
        # Implemented as a threshold compare on hashed per-edge bits; the two
        # directions use the two independent 16-bit halves of one 32-bit hash
        # (the symmetric sparse matrix has independent nnz per direction).
        seed = seed_ref[0]
        tm_u = a.shape[0]
        rows = gi * tm_u + lax.broadcasted_iota(jnp.int32, a.shape, 0)
        cols = gj * tm_i + lax.broadcasted_iota(jnp.int32, a.shape, 1)
        h = _hash_bits(rows * jnp.int32(n_cols_pad) + cols, seed)
        thr = jnp.int32(int(round((1.0 - float(edge_dropout_rate)) * 65536.0)))
        keep_u = (h & jnp.int32(0xFFFF)) >= thr
        keep_i = lax.shift_right_logical(h, jnp.int32(16)) >= thr
        zero = jnp.zeros_like(a)
        a_u = jnp.where(keep_u, a, zero)
        a_i = jnp.where(keep_i, a, zero)
    else:
        a_u = a
        a_i = a

    # users <- R @ items : slice the resident item-embedding slab at the gj tile.
    j0 = gj * tm_i
    e_i = e_items_ref[pl.ds(j0, tm_i), :]             # (tm_i, D) bf16
    o_users_ref[...] += jnp.dot(a_u, e_i, preferred_element_type=jnp.float32)

    # items <- R^T @ users : transposed contraction, fed straight to the MXU.
    contrib_i = lax.dot_general(
        a_i, e_users_ref[...],
        dimension_numbers=(((0,), (0,)), ((), ())),
        preferred_element_type=jnp.float32)           # (tm_i, D) f32
    o_items_ref[pl.ds(j0, tm_i), :] += contrib_i

    if apply_edge_dropout:
        scale = jnp.float32(1.0 / (1.0 - float(edge_dropout_rate)))

        @pl.when(gj == nj - 1)
        def _finalize_users():
            o_users_ref[...] *= scale

        @pl.when(jnp.logical_and(gi == ni - 1, gj == nj - 1))
        def _finalize_items():
            o_items_ref[...] *= scale


def fused_hop(r_pad_bf16, e_users, e_items, seed, *, tm_u, tm_i,
              edge_dropout_rate, apply_edge_dropout):
    """One hop of bipartite message passing (both directions, adjacency read once)."""
    mu, mi = r_pad_bf16.shape
    _, dp = e_users.shape
    assert e_users.shape[0] == mu and e_items.shape == (mi, dp)
    assert mu % tm_u == 0 and mi % tm_i == 0 and dp % _LANE == 0

    kernel = functools.partial(
        _fused_hop_kernel,
        tm_i=tm_i, n_cols_pad=mi,
        edge_dropout_rate=float(edge_dropout_rate),
        apply_edge_dropout=bool(apply_edge_dropout))

    return pl.pallas_call(
        kernel,
        out_shape=(jax.ShapeDtypeStruct((mu, dp), jnp.float32),
                   jax.ShapeDtypeStruct((mi, dp), jnp.float32)),
        grid_spec=pltpu.PrefetchScalarGridSpec(
            num_scalar_prefetch=1,                    # per-hop dropout seed in SMEM
            grid=(mu // tm_u, mi // tm_i),            # item axis is the inner reduction
            in_specs=[
                # adjacency tile: each tile DMA'd exactly once per hop
                pl.BlockSpec((tm_u, tm_i), lambda gi, gj, seed: (gi, gj)),
                # item embedding slab: constant block index -> VMEM-resident, one DMA
                pl.BlockSpec((mi, dp), lambda gi, gj, seed: (0, 0)),
                # user embedding row tile: one DMA per outer row tile
                pl.BlockSpec((tm_u, dp), lambda gi, gj, seed: (gi, 0)),
            ],
            out_specs=[
                # user output: resident across the gj reduction, accumulated in place
                pl.BlockSpec((tm_u, dp), lambda gi, gj, seed: (gi, 0)),
                # item output: resident across the whole grid, accumulated in place
                pl.BlockSpec((mi, dp), lambda gi, gj, seed: (0, 0)),
            ],
        ),
        compiler_params=pltpu.CompilerParams(
            dimension_semantics=("arbitrary", "arbitrary"),
            vmem_limit_bytes=_VMEM_LIMIT,
        ),
    )(seed, r_pad_bf16, e_items.astype(jnp.bfloat16), e_users.astype(jnp.bfloat16))


# ----------------------------------------------------------------------------
# GraphConv.forward (padding / stacking / message dropout in JAX, hops in Pallas)
# ----------------------------------------------------------------------------
def graph_conv_forward(
    user_embed,            # (n_users, D) f32
    item_embed,            # (n_items, D) f32
    ui_norm,               # (n_users, n_items) normalized interaction block R;
                           # the module's interact_mat is [[0, R], [R^T, 0]]
    *,
    n_hops,
    edge_dropout_rate=0.5,
    mess_dropout_rate=0.1,
    mess_dropout=True,
    edge_dropout=True,
    rng=None,
):
    n_users, D = user_embed.shape
    n_items = item_embed.shape[0]
    assert ui_norm.shape == (n_users, n_items)

    tm_u = _choose_tile(n_users)
    tm_i = _choose_tile(n_items)
    mu = _round_up(max(n_users, tm_u), tm_u)
    mi = _round_up(max(n_items, tm_i), tm_i)
    dp = _round_up(D, _LANE)

    est = _vmem_estimate(tm_u, tm_i, mi, dp)
    assert est <= _VMEM_SOFT_CAP, (
        f"fused-hop VMEM estimate {est} B exceeds budget; see TODO about the "
        f"two-pass / CSR fallback for very large graphs")

    # Pad + cast the adjacency block ONCE (bf16 halves the dominant HBM stream).
    # No R^T copy is materialized: the kernel contracts R transposed on the MXU.
    r = (jnp.zeros((mu, mi), jnp.float32)
         .at[:n_users, :n_items].set(ui_norm)
         .astype(jnp.bfloat16))

    # Node states stay padded (zero rows/cols propagate zeros) until the final slice.
    u = jnp.zeros((mu, dp), jnp.float32).at[:n_users, :D].set(user_embed)
    it = jnp.zeros((mi, dp), jnp.float32).at[:n_items, :D].set(item_embed)

    if rng is None:
        rng = jax.random.PRNGKey(0)

    embs_u, embs_i = [u], [it]
    for _ in range(n_hops):
        rng, ks, kmu, kmi = jax.random.split(rng, 4)
        seed = jax.random.randint(ks, (1,), 0, jnp.iinfo(jnp.int32).max,
                                  dtype=jnp.int32)

        new_u, new_i = fused_hop(
            r, u, it, seed, tm_u=tm_u, tm_i=tm_i,
            edge_dropout_rate=edge_dropout_rate,
            apply_edge_dropout=edge_dropout)

        if mess_dropout:
            # nn.Dropout(p): zero with prob p, scale survivors by 1/(1-p).
            keep_u = (jax.random.uniform(kmu, new_u.shape) >= mess_dropout_rate
                      ).astype(new_u.dtype)
            keep_i = (jax.random.uniform(kmi, new_i.shape) >= mess_dropout_rate
                      ).astype(new_i.dtype)
            new_u = new_u * keep_u / (1.0 - mess_dropout_rate)
            new_i = new_i * keep_i / (1.0 - mess_dropout_rate)

        u, it = new_u, new_i
        embs_u.append(u)
        embs_i.append(it)

    user_out = jnp.stack(embs_u, axis=1)[:n_users, :, :D]   # (n_users, n_hops+1, D)
    item_out = jnp.stack(embs_i, axis=1)[:n_items, :, :D]   # (n_items, n_hops+1, D)
    return user_out, item_out


# ----------------------------------------------------------------------------
# Demo / self-check
# ----------------------------------------------------------------------------
if __name__ == "__main__":
    n_users, n_items, D, n_hops = 300, 520, 64, 2
    N = n_users + n_items

    key = jax.random.PRNGKey(0)
    k_u, k_i, k_a, k_drop = jax.random.split(key, 4)

    user_embed = jax.random.normal(k_u, (n_users, D), dtype=jnp.float32)
    item_embed = jax.random.normal(k_i, (n_items, D), dtype=jnp.float32)

    # Deterministic sparse bipartite normalized interaction block R.
    ui = (jax.random.uniform(k_a, (n_users, n_items)) < 0.05).astype(jnp.float32)
    deg_u = jnp.clip(ui.sum(axis=1, keepdims=True), 1.0)
    deg_i = jnp.clip(ui.sum(axis=0, keepdims=True), 1.0)
    ui_norm = ui / jnp.sqrt(deg_u) / jnp.sqrt(deg_i)

    # 1) Eval-mode pass (no dropout) — check the fused Pallas hop against the dense
    #    interact_mat = [[0, R], [R^T, 0]] reference (bf16-rounded operands to mirror
    #    the kernel's bf16 MXU inputs / f32 accumulation).
    u_out, i_out = graph_conv_forward(
        user_embed, item_embed, ui_norm,
        n_hops=n_hops, mess_dropout=False, edge_dropout=False,
    )
    jax.block_until_ready((u_out, i_out))

    interact_mat = jnp.zeros((N, N), jnp.float32)
    interact_mat = interact_mat.at[:n_users, n_users:].set(ui_norm)
    interact_mat = interact_mat.at[n_users:, :n_users].set(ui_norm.T)
    a_bf = interact_mat.astype(jnp.bfloat16).astype(jnp.float32)

    agg = jnp.concatenate([user_embed, item_embed], axis=0)
    ref_list = [agg]
    for _ in range(n_hops):
        agg = jnp.matmul(a_bf, agg.astype(jnp.bfloat16).astype(jnp.float32),
                         precision=jax.lax.Precision.HIGHEST)
        ref_list.append(agg)
    ref = jnp.stack(ref_list, axis=1)

    assert u_out.shape == (n_users, n_hops + 1, D)
    assert i_out.shape == (n_items, n_hops + 1, D)
    assert jnp.allclose(u_out, ref[:n_users], atol=1e-2, rtol=1e-2)
    assert jnp.allclose(i_out, ref[n_users:], atol=1e-2, rtol=1e-2)

    # 2) Training-mode pass with fused in-kernel edge dropout + message dropout,
    #    matching the module's default forward(..., True, True) behaviour.
    u_tr, i_tr = graph_conv_forward(
        user_embed, item_embed, ui_norm,
        n_hops=n_hops, mess_dropout=True, edge_dropout=True, rng=k_drop,
    )
    jax.block_until_ready((u_tr, i_tr))
    assert u_tr.shape == (n_users, n_hops + 1, D)
    assert i_tr.shape == (n_items, n_hops + 1, D)
    assert bool(jnp.all(jnp.isfinite(u_tr))) and bool(jnp.all(jnp.isfinite(i_tr)))

    print("KERNEL_OK")
</pallas_src>

<mosaic_0001>
module attributes {stable_mosaic.version = 11 : i64} {
  func.func @_fused_hop_kernel(%arg0: i32, %arg1: i32, %arg2: memref<1xi32, #tpu.memory_space<smem>>, %arg3: memref<512x256xbf16, #tpu.memory_space<vmem>>, %arg4: memref<768x128xbf16, #tpu.memory_space<vmem>>, %arg5: memref<512x128xbf16, #tpu.memory_space<vmem>>, %arg6: memref<512x128xf32, #tpu.memory_space<vmem>>, %arg7: memref<768x128xf32, #tpu.memory_space<vmem>>) attributes {dimension_semantics = [#tpu.dimension_semantics<arbitrary>, #tpu.dimension_semantics<arbitrary>], iteration_bounds = array<i64: 1, 3>, scalar_prefetch = 1 : i64, scratch_operands = 0 : i64, tpu.core_type = #tpu.core_type<tc>, window_params = [{transform_indices = @transform_0, window_bounds = array<i64: 512, 256>}, {pipeline_mode = #tpu.pipeline_mode<synchronous>, transform_indices = @transform_1, window_bounds = array<i64: 768, 128>}, {transform_indices = @transform_2, window_bounds = array<i64: 512, 128>}, {transform_indices = @transform_3, window_bounds = array<i64: 512, 128>}, {pipeline_mode = #tpu.pipeline_mode<synchronous>, transform_indices = @transform_4, window_bounds = array<i64: 768, 128>}]} {
    %c0_i32 = arith.constant 0 : i32
    %0 = arith.cmpi eq, %arg0, %c0_i32 : i32
    %c0_i32_0 = arith.constant 0 : i32
    %1 = arith.cmpi eq, %arg1, %c0_i32_0 : i32
    %2 = arith.andi %0, %1 : i1
    %3 = arith.extui %2 : i1 to i32
    %c0_i32_1 = arith.constant 0 : i32
    %4 = arith.cmpi ne, %3, %c0_i32_1 : i32
    scf.if %4 {
      %cst_15 = arith.constant 0.000000e+00 : f32
      %23 = vector.broadcast %cst_15 : f32 to vector<768x128xf32>
      %c0_16 = arith.constant 0 : index
      %c0_17 = arith.constant 0 : index
      %24 = vector.load %arg7[%c0_16, %c0_17] : memref<768x128xf32, #tpu.memory_space<vmem>>, vector<768x128xf32>
      tpu.vector_store %arg7[%c0_16, %c0_17], %23 {strides = array<i32>} : memref<768x128xf32, #tpu.memory_space<vmem>>, vector<768x128xf32>,
    } else {
    }
    %c0_i32_2 = arith.constant 0 : i32
    %5 = arith.cmpi eq, %arg1, %c0_i32_2 : i32
    %6 = arith.extui %5 : i1 to i32
    %c0_i32_3 = arith.constant 0 : i32
    %7 = arith.cmpi ne, %6, %c0_i32_3 : i32
    scf.if %7 {
      %cst_15 = arith.constant 0.000000e+00 : f32
      %23 = vector.broadcast %cst_15 : f32 to vector<512x128xf32>
      %c0_16 = arith.constant 0 : index
      %c0_17 = arith.constant 0 : index
      %24 = vector.load %arg6[%c0_16, %c0_17] : memref<512x128xf32, #tpu.memory_space<vmem>>, vector<512x128xf32>
      tpu.vector_store %arg6[%c0_16, %c0_17], %23 {strides = array<i32>} : memref<512x128xf32, #tpu.memory_space<vmem>>, vector<512x128xf32>,
    } else {
    }
    %c0 = arith.constant 0 : index
    %c0_4 = arith.constant 0 : index
    %8 = vector.load %arg3[%c0, %c0_4] : memref<512x256xbf16, #tpu.memory_space<vmem>>, vector<512x256xbf16>
    %c256_i32 = arith.constant 256 : i32
    %9 = arith.muli %arg1, %c256_i32 : i32
    %10 = arith.index_cast %9 : i32 to index
    %c0_5 = arith.constant 0 : index
    %11 = vector.load %arg4[%10, %c0_5] : memref<768x128xbf16, #tpu.memory_space<vmem>>, vector<256x128xbf16>
    %c0_6 = arith.constant 0 : index
    %c0_7 = arith.constant 0 : index
    %12 = vector.load %arg6[%c0_6, %c0_7] : memref<512x128xf32, #tpu.memory_space<vmem>>, vector<512x128xf32>
    %cst = arith.constant dense<0.000000e+00> : vector<512x128xf32>
    %13 = tpu.matmul %8, %11, %cst {dimension_numbers = #tpu.dot_dimension_numbers<[1], [0], [0], [1], [0, 0, 1, 1], [], []>} : vector<512x256xbf16>, vector<256x128xbf16>, vector<512x128xf32> -> vector<512x128xf32>
    %14 = arith.addf %12, %13 : vector<512x128xf32>
    %c0_8 = arith.constant 0 : index
    %c0_9 = arith.constant 0 : index
    %15 = vector.load %arg6[%c0_8, %c0_9] : memref<512x128xf32, #tpu.memory_space<vmem>>, vector<512x128xf32>
    tpu.vector_store %arg6[%c0_8, %c0_9], %14 {strides = array<i32>} : memref<512x128xf32, #tpu.memory_space<vmem>>, vector<512x128xf32>,
    %c0_10 = arith.constant 0 : index
    %c0_11 = arith.constant 0 : index
    %16 = vector.load %arg5[%c0_10, %c0_11] : memref<512x128xbf16, #tpu.memory_space<vmem>>, vector<512x128xbf16>
    %cst_12 = arith.constant dense<0.000000e+00> : vector<256x128xf32>
    %17 = tpu.matmul %8, %16, %cst_12 {dimension_numbers = #tpu.dot_dimension_numbers<[0], [0], [1], [1], [0, 1, 1, 1], [], []>} : vector<512x256xbf16>, vector<512x128xbf16>, vector<256x128xf32> -> vector<256x128xf32>
    %18 = arith.index_cast %9 : i32 to index
    %c0_13 = arith.constant 0 : index
    %19 = vector.load %arg7[%18, %c0_13] : memref<768x128xf32, #tpu.memory_space<vmem>>, vector<256x128xf32>
    %20 = arith.addf %19, %17 : vector<256x128xf32>
    %21 = arith.index_cast %9 : i32 to index
    %c0_14 = arith.constant 0 : index
    %22 = vector.load %arg7[%21, %c0_14] : memref<768x128xf32, #tpu.memory_space<vmem>>, vector<256x128xf32>
    tpu.vector_store %arg7[%21, %c0_14], %20 {strides = array<i32>} : memref<768x128xf32, #tpu.memory_space<vmem>>, vector<256x128xf32>,
    return
  }
  func.func @transform_0(%arg0: i32, %arg1: i32, %arg2: memref<1xi32, #tpu.memory_space<smem>>) -> (i32, i32) {
    %c0_i32 = arith.constant 0 : i32
    return %arg0, %arg1 : i32, i32
  }
  func.func @transform_1(%arg0: i32, %arg1: i32, %arg2: memref<1xi32, #tpu.memory_space<smem>>) -> (i32, i32) {
    %c0_i32 = arith.constant 0 : i32
    %c0_i32_0 = arith.constant 0 : i32
    %c0_i32_1 = arith.constant 0 : i32
    return %c0_i32, %c0_i32_0 : i32, i32
  }
  func.func @transform_2(%arg0: i32, %arg1: i32, %arg2: memref<1xi32, #tpu.memory_space<smem>>) -> (i32, i32) {
    %c0_i32 = arith.constant 0 : i32
    %c0_i32_0 = arith.constant 0 : i32
    return %arg0, %c0_i32 : i32, i32
  }
  func.func @transform_3(%arg0: i32, %arg1: i32, %arg2: memref<1xi32, #tpu.memory_space<smem>>) -> (i32, i32) {
    %c0_i32 = arith.constant 0 : i32
    %c0_i32_0 = arith.constant 0 : i32
    return %arg0, %c0_i32 : i32, i32
  }
  func.func @transform_4(%arg0: i32, %arg1: i32, %arg2: memref<1xi32, #tpu.memory_space<smem>>) -> (i32, i32) {
    %c0_i32 = arith.constant 0 : i32
    %c0_i32_0 = arith.constant 0 : i32
    %c0_i32_1 = arith.constant 0 : i32
    return %c0_i32, %c0_i32_0 : i32, i32
  }
}

</mosaic_0001>

<llo_original>
// kernel: tpu_custom_call.1
$region0: #{tpu_custom_call.1}
  #allocation0 [shape = 'u32[]', space=smem, size = 0x4, offset = 0x4, fixed_abs, tag = 'smem constant byte address 0x4 - core index']
  #allocation1 [shape = 'u32[144,128]{1,0:T(1,128)}', space=vmem, size = 0x12000, scoped, tag = 'internal scratch']
  #allocation2 [shape = 's32[1]{0}', space=sflag, size = 0x4, scoped, tag = 'scoped memory for tpu_custom_call.1']
  #allocation3 [shape = 's32[1]{0:T(128)S(6)}', space=smem, size = 0x200, scoped, tag = 'prefetched SMEM operand 0']
  %s0 = inlined_call_operand.<no memory space> [shape: s32[1], index: 0, kind: input, shape index: {}]
  %s1 = inlined_call_operand.hbm [shape: bf16[512,768], index: 1, kind: input, shape index: {}]
  %s2 = inlined_call_operand.hbm [shape: bf16[768,128], index: 2, kind: input, shape index: {}]
  %s3 = inlined_call_operand.hbm [shape: bf16[512,128], index: 3, kind: input, shape index: {}]
  %s4 = inlined_call_operand.hbm [shape: f32[512,128], index: 4, kind: output, shape index: {0}]
  %s5 = inlined_call_operand.hbm [shape: f32[768,128], index: 5, kind: output, shape index: {1}]
  %6 = xla_tuple %s4, %s5
  %s7 = sld [smem:[#allocation0]]
  $region73: #{tpu_custom_call.1} parent=0
    _
  %s9 = ssub.s32 1, %s7
  %s10 = scalar_select 0, %s9, %s7
  %11 = sst [smem:[#allocation3]] %s0
  $region1: #{tpu_custom_call.1} parent=0
    #allocation4 [shape = 'u8[524288]{0}', space=vmem, size = 0x80000, scoped, tag = 'input window, operand 1']
    #allocation5 [shape = 's32[2]{0}', space=sflag, size = 0x8, scoped, tag = 'scoped memory for tpu_custom_call.1']
    #allocation6 [shape = 's32[2]{0}', space=sflag, size = 0x8, scoped, tag = 'scoped memory for tpu_custom_call.1']
    #allocation7 [shape = 'u8[196608]{0}', space=vmem, size = 0x30000, scoped, tag = 'input window, operand 2, single buffered']
    #allocation8 [shape = 's32[1]{0}', space=sflag, size = 0x4, scoped, tag = 'scoped memory for tpu_custom_call.1']
    #allocation9 [shape = 'u8[131072]{0}', space=vmem, size = 0x20000, scoped, tag = 'input window, operand 3, single buffered']
    #allocation10 [shape = 'u8[262144]{0}', space=vmem, size = 0x40000, scoped, tag = 'output window, operand 0, single buffered']
    #allocation11 [shape = 'u8[393216]{0}', space=vmem, size = 0x60000, scoped, tag = 'output window, operand 1, single buffered']
    #allocation12 [shape = 's32[1]{0}', space=sflag, size = 0x4, scoped, tag = 'scoped memory for tpu_custom_call.1']
    %12 = vsyncpa [#allocation5], 0
    %s13 = scalar_lea.sflag [#allocation5], 1
    %14 = vsyncpa %s13, 0
    %15 = vsyncpa [#allocation8], 0
    %16 = vsyncpa [#allocation6], 0
    %17 = vsyncpa [#allocation12], 0
    loop: start=0, step=1, limit=5
    $region2: #{tpu_custom_call.1} parent=1 // loop_pre_header
      _
    $region3: #{tpu_custom_call.1} parent=1 // loop_header
      %s19 = sphi 0, %s23
      %p20 = scmp.ge.s32.totalorder %s19, 5
      %s26 = sphi 0, %s38
      %s27 = sphi 0, %s34
      %s28 = sphi 0, %s26
      %s29 = sphi 0, %s27
      %s30 = sphi 0, %s28
      %s31 = sphi 0, %s29
      %s43 = sphi 0, %s45
      %s46 = sphi 0, %s43
      %s47 = sphi 0, %s46
      %s63 = sphi 0, %s47
      %s67 = sphi 0, %s67
      %s69 = sphi 0, %s67
      %s70 = sphi 0, %s69
      %s84 = sphi 0, %s70
      %s90 = sphi 0, %s92
      %s93 = sphi 0, %s90
      %s94 = sphi 0, %s93
      %s110 = sphi 0, %s94
      %s116 = sphi 0, %s118
      %s119 = sphi 0, %s116
      %s120 = sphi 0, %s119
      %s136 = sphi 0, %s120
      %s140 = sphi 0, %s140
      %s142 = sphi 0, %s140
      %s143 = sphi 0, %s142
      %s157 = sphi 0, %s143
    $region4: #{tpu_custom_call.1} parent=1 // loop_header_branch
      %22 = sbr.rel (%p20) target = $region8
    $region5: #{tpu_custom_call.1} parent=1 // loop_body
      %s24 = ssub.s32 %s19, 1
      %s25 = ssub.s32 %s19, 2
      %s32 = sadd.s32 1, %s27
      %p33 = scmp.ge.s32.totalorder %s32, 3
      %s34 = scalar_select %p33, 0, %s32
      %s35 = sadd.s32 1, %s26
      %s36 = scalar_select %p33, %s35, %s26
      %p37 = scmp.ge.s32.totalorder %s36, 1
      %s38 = scalar_select %p37, 0, %s36
      %s39 = ssub.s32 %s26, %s38
      %s40 = ssub.s32 %s27, %s34
      %s41 = sor.u32 %s39, %s40
      %p42 = scmp.eq.s32.totalorder %s41, 0
      %s44 = sadd.s32 %s43, 1
      %s45 = scalar_select %p42, %s43, %s44
      %p48 = pneg %p42
      %p49 = scmp.eq.s32.totalorder %s19, 2
      %p50 = por %p48, %p49
      %p51 = scmp.ne.s32.totalorder %s43, %s46
      %p52 = scmp.eq.s32.totalorder %s19, 0
      %p53 = por %p51, %p52
      %p54 = scmp.ne.s32.totalorder %s43, %s46
      %p55 = scmp.eq.s32.totalorder %s24, 2
      %p56 = por %p54, %p55
      %p57 = scmp.ne.s32.totalorder %s46, %s47
      %p58 = scmp.eq.s32.totalorder %s24, 0
      %p59 = por %p57, %p58
      %p60 = scmp.ne.s32.totalorder %s46, %s47
      %p61 = scmp.eq.s32.totalorder %s25, 2
      %p62 = por %p60, %p61
      %p64 = scmp.ne.s32.totalorder %s47, %s63
      %p65 = scmp.eq.s32.totalorder %s25, 0
      %p66 = por %p64, %p65
      %s68 = sadd.s32 %s67, 1
      %p71 = scmp.eq.s32.totalorder %s19, 2
      %p72 = scmp.ne.s32.totalorder %s67, %s69
      %p73 = scmp.eq.s32.totalorder %s19, 0
      %p74 = por %p72, %p73
      %p75 = scmp.ne.s32.totalorder %s67, %s69
      %p76 = scmp.eq.s32.totalorder %s24, 2
      %p77 = por %p75, %p76
      %p78 = scmp.ne.s32.totalorder %s69, %s70
      %p79 = scmp.eq.s32.totalorder %s24, 0
      %p80 = por %p78, %p79
      %p81 = scmp.ne.s32.totalorder %s69, %s70
      %p82 = scmp.eq.s32.totalorder %s25, 2
      %p83 = por %p81, %p82
      %p85 = scmp.ne.s32.totalorder %s70, %s84
      %p86 = scmp.eq.s32.totalorder %s25, 0
      %p87 = por %p85, %p86
      %s88 = ssub.s32 %s26, %s38
      %p89 = scmp.eq.s32.totalorder %s88, 0
      %s91 = sadd.s32 %s90, 1
      %s92 = scalar_select %p89, %s90, %s91
      %p95 = pneg %p89
      %p96 = scmp.eq.s32.totalorder %s19, 2
      %p97 = por %p95, %p96
      %p98 = scmp.ne.s32.totalorder %s90, %s93
      %p99 = scmp.eq.s32.totalorder %s19, 0
      %p100 = por %p98, %p99
      %p101 = scmp.ne.s32.totalorder %s90, %s93
      %p102 = scmp.eq.s32.totalorder %s24, 2
      %p103 = por %p101, %p102
      %p104 = scmp.ne.s32.totalorder %s93, %s94
      %p105 = scmp.eq.s32.totalorder %s24, 0
      %p106 = por %p104, %p105
      %p107 = scmp.ne.s32.totalorder %s93, %s94
      %p108 = scmp.eq.s32.totalorder %s25, 2
      %p109 = por %p107, %p108
      %p111 = scmp.ne.s32.totalorder %s94, %s110
      %p112 = scmp.eq.s32.totalorder %s25, 0
      %p113 = por %p111, %p112
      %s114 = ssub.s32 %s26, %s38
      %p115 = scmp.eq.s32.totalorder %s114, 0
      %s117 = sadd.s32 %s116, 1
      %s118 = scalar_select %p115, %s116, %s117
      %p121 = pneg %p115
      %p122 = scmp.eq.s32.totalorder %s19, 2
      %p123 = por %p121, %p122
      %p124 = scmp.ne.s32.totalorder %s116, %s119
      %p125 = scmp.eq.s32.totalorder %s19, 0
      %p126 = por %p124, %p125
      %p127 = scmp.ne.s32.totalorder %s116, %s119
      %p128 = scmp.eq.s32.totalorder %s24, 2
      %p129 = por %p127, %p128
      %p130 = scmp.ne.s32.totalorder %s119, %s120
      %p131 = scmp.eq.s32.totalorder %s24, 0
      %p132 = por %p130, %p131
      %p133 = scmp.ne.s32.totalorder %s119, %s120
      %p134 = scmp.eq.s32.totalorder %s25, 2
      %p135 = por %p133, %p134
      %p137 = scmp.ne.s32.totalorder %s120, %s136
      %p138 = scmp.eq.s32.totalorder %s25, 0
      %p139 = por %p137, %p138
      %s141 = sadd.s32 %s140, 1
      %p144 = scmp.eq.s32.totalorder %s19, 2
      %p145 = scmp.ne.s32.totalorder %s140, %s142
      %p146 = scmp.eq.s32.totalorder %s19, 0
      %p147 = por %p145, %p146
      %p148 = scmp.ne.s32.totalorder %s140, %s142
      %p149 = scmp.eq.s32.totalorder %s24, 2
      %p150 = por %p148, %p149
      %p151 = scmp.ne.s32.totalorder %s142, %s143
      %p152 = scmp.eq.s32.totalorder %s24, 0
      %p153 = por %p151, %p152
      %p154 = scmp.ne.s32.totalorder %s142, %s143
      %p155 = scmp.eq.s32.totalorder %s25, 2
      %p156 = por %p154, %p155
      %p158 = scmp.ne.s32.totalorder %s143, %s157
      %p159 = scmp.eq.s32.totalorder %s25, 0
      %p160 = por %p158, %p159
      %p161 = scmp.le.s32.totalorder 1, %s19
      %p162 = scmp.lt.s32.totalorder %s19, 4
      %p163 = pnand %p161, %p162
      %p164 = pneg %p163
      // Predicated region
      $region9: #{tpu_custom_call.1} parent=5 // pred_check
        _
      $region10: #{tpu_custom_call.1} parent=5 // pred_check_branch
        %166 = sbr.rel (%p163) target = $region12
      $region11: #{tpu_custom_call.1} parent=5 // pred_region
        %s167 = ssub.s32 %s19, 1
        // Predicated region
        $region13: #{tpu_custom_call.1} parent=11 // pred_check
          %p168 = pneg %p80
        $region14: #{tpu_custom_call.1} parent=11 // pred_check_branch
          %170 = sbr.rel (%p168) target = $region16
        $region15: #{tpu_custom_call.1} parent=11 // pred_region
          %s172 = ssub.s32 6144, 6144
          %173 = vsyncadd [#allocation8], %s172
          %s174 = sshll.u32 [#allocation7], 4
          %s175 = int_to_ptr.vmem [resolvable:$true] %s174
          %180 = dma.hbm_to_vmem [thread:$0]  %s2, 6144, %s175, [#allocation8], 64, 64, 4
        $region16: #{tpu_custom_call.1} parent=11 // pred_fallthru
          _
        // Predicated region
        $region17: #{tpu_custom_call.1} parent=11 // pred_check
          %p181 = pneg %p106
        $region18: #{tpu_custom_call.1} parent=11 // pred_check_branch
          %183 = sbr.rel (%p181) target = $region20
        $region19: #{tpu_custom_call.1} parent=11 // pred_region
          %s184 = smul.u32 64, %s28
          %s186 = ssub.s32 4096, 4096
          %187 = vsyncadd [#allocation8], %s186
          %s188 = smul.addr %s184, 64
          %s189 = scalar_lea.hbm %s3, %s188
          %s190 = sshll.u32 [#allocation9], 4
          %s191 = int_to_ptr.vmem [resolvable:$true] %s190
          %196 = dma.hbm_to_vmem [thread:$0]  %s189, 4096, %s191, [#allocation8], 64, 64, 4
        $region20: #{tpu_custom_call.1} parent=11 // pred_fallthru
          _
      $region12: #{tpu_custom_call.1} parent=5 // pred_fallthru
        _
      %p197 = scmp.lt.s32.totalorder %s19, 3
      // Predicated region
      $region21: #{tpu_custom_call.1} parent=5 // pred_check
        %p198 = pneg %p197
      $region22: #{tpu_custom_call.1} parent=5 // pred_check_branch
        %200 = sbr.rel (%p198) target = $region24
      $region23: #{tpu_custom_call.1} parent=5 // pred_region
        // Predicated region
        $region25: #{tpu_custom_call.1} parent=23 // pred_check
          %p201 = pneg %p53
        $region26: #{tpu_custom_call.1} parent=23 // pred_check_branch
          %203 = sbr.rel (%p201) target = $region28
        $region27: #{tpu_custom_call.1} parent=23 // pred_region
          %s204 = sand.u32 %s43, 1
          %s205 = scalar_lea.sflag [#allocation5], %s204
          %s206 = sand.u32 %s43, 1
          %s207 = smul.addr %s206, 512
          %s208 = scalar_lea.vmem [#allocation4], %s207
          %s209 = smul.u32 64, %s26
          %s210 = smul.u32 2, %s27
          %s212 = ssub.s32 8192, 8192
          %213 = vsyncadd %s205, %s212
          %s214 = smul.addr %s209, 6
          %s215 = sadd.s32 %s210, %s214
          %s216 = smul.addr %s215, 64
          %s217 = scalar_lea.hbm %s1, %s216
          %s218 = sshll.u32 %s208, 4
          %s219 = int_to_ptr.vmem [resolvable:$true] %s218
          %224 = dma.hbm_to_vmem [thread:$0]  %s217, 8192, %s219, %s205, 384, 128, 8
        $region28: #{tpu_custom_call.1} parent=23 // pred_fallthru
          _
      $region24: #{tpu_custom_call.1} parent=5 // pred_fallthru
        _
      %p225 = scmp.le.s32.totalorder 1, %s19
      %p226 = scmp.lt.s32.totalorder %s19, 4
      %p227 = pnand %p225, %p226
      %p228 = pneg %p227
      // Predicated region
      $region29: #{tpu_custom_call.1} parent=5 // pred_check
        _
      $region30: #{tpu_custom_call.1} parent=5 // pred_check_branch
        %230 = sbr.rel (%p227) target = $region32
      $region31: #{tpu_custom_call.1} parent=5 // pred_region
        %s231 = ssub.s32 %s19, 1
        %s232 = sand.u32 %s46, 1
        %s233 = scalar_lea.sflag [#allocation5], %s232
        %s234 = sand.u32 %s46, 1
        %s235 = smul.addr %s234, 512
        %s236 = scalar_lea.vmem [#allocation4], %s235
        // Predicated region
        $region33: #{tpu_custom_call.1} parent=31 // pred_check
          %p237 = pneg %p59
        $region34: #{tpu_custom_call.1} parent=31 // pred_check_branch
          %239 = sbr.rel (%p237) target = $region36
        $region35: #{tpu_custom_call.1} parent=31 // pred_region
          %240 = dma.done %s233, 8192
        $region36: #{tpu_custom_call.1} parent=31 // pred_fallthru
          _
        // Predicated region
        $region37: #{tpu_custom_call.1} parent=31 // pred_check
          %p241 = pneg %p80
        $region38: #{tpu_custom_call.1} parent=31 // pred_check_branch
          %243 = sbr.rel (%p241) target = $region40
        $region39: #{tpu_custom_call.1} parent=31 // pred_region
          %244 = dma.done [#allocation8], 6144
        $region40: #{tpu_custom_call.1} parent=31 // pred_fallthru
          _
        // Predicated region
        $region41: #{tpu_custom_call.1} parent=31 // pred_check
          %p245 = pneg %p106
        $region42: #{tpu_custom_call.1} parent=31 // pred_check_branch
          %247 = sbr.rel (%p245) target = $region44
        $region43: #{tpu_custom_call.1} parent=31 // pred_region
          %248 = dma.done [#allocation8], 4096
        $region44: #{tpu_custom_call.1} parent=31 // pred_fallthru
          _
        %s249 = sand.u32 %s46, 1
        %s250 = scalar_lea.sflag [#allocation5], %s249
        %s251 = sand.u32 %s46, 1
        %s252 = smul.addr %s251, 512
        %s253 = scalar_lea.vmem [#allocation4], %s252
        %p254 = pneg %p59
        %p255 = pneg %p56
        %p256 = pneg %p80
        %p257 = pneg %p77
        %p258 = pneg %p106
        %p259 = pneg %p103
        %p260 = pneg %p132
        %p261 = pneg %p129
        %p262 = pneg %p153
        %p263 = pneg %p150
        %s264 = smul.u32 64, %s28
        %s265 = smul.u32 2, %s29
        %s266 = smul.u32 64, %s28
        %s267 = smul.u32 64, %s28
        %p269 = scmp.eq.s32.totalorder %s28, 0
        %p270 = scmp.eq.s32.totalorder %s29, 0
        %p271 = pnand %p269, %p270
        %p272 = pneg %p271
        // Predicated region
        $region45: #{tpu_custom_call.1} parent=31 // pred_check
          _
        $region46: #{tpu_custom_call.1} parent=31 // pred_check_branch
          %274 = sbr.rel (%p271) target = $region48
        $region47: #{tpu_custom_call.1} parent=31 // pred_region
          %275 = vst [vmem:[#allocation11] sm:$0xff] 0.0
          %276 = vst [vmem:[#allocation11 + $0x8] sm:$0xff] 0.0
          %277 = vst [vmem:[#allocation11 + $0x10] sm:$0xff] 0.0
          %278 = vst [vmem:[#allocation11 + $0x18] sm:$0xff] 0.0
          %279 = vst [vmem:[#allocation11 + $0x20] sm:$0xff] 0.0
          %280 = vst [vmem:[#allocation11 + $0x28] sm:$0xff] 0.0
          %281 = vst [vmem:[#allocation11 + $0x30] sm:$0xff] 0.0
          %282 = vst [vmem:[#allocation11 + $0x38] sm:$0xff] 0.0
          %283 = vst [vmem:[#allocation11 + $0x40] sm:$0xff] 0.0
          %284 = vst [vmem:[#allocation11 + $0x48] sm:$0xff] 0.0
          %285 = vst [vmem:[#allocation11 + $0x50] sm:$0xff] 0.0
          %286 = vst [vmem:[#allocation11 + $0x58] sm:$0xff] 0.0
          %287 = vst [vmem:[#allocation11 + $0x60] sm:$0xff] 0.0
          %288 = vst [vmem:[#allocation11 + $0x68] sm:$0xff] 0.0
          %289 = vst [vmem:[#allocation11 + $0x70] sm:$0xff] 0.0
          %290 = vst [vmem:[#allocation11 + $0x78] sm:$0xff] 0.0
          %291 = vst [vmem:[#allocation11 + $0x80] sm:$0xff] 0.0
          %292 = vst [vmem:[#allocation11 + $0x88] sm:$0xff] 0.0
          %293 = vst [vmem:[#allocation11 + $0x90] sm:$0xff] 0.0
          %294 = vst [vmem:[#allocation11 + $0x98] sm:$0xff] 0.0
          %295 = vst [vmem:[#allocation11 + $0xa0] sm:$0xff] 0.0
          %296 = vst [vmem:[#allocation11 + $0xa8] sm:$0xff] 0.0
          %297 = vst [vmem:[#allocation11 + $0xb0] sm:$0xff] 0.0
          %298 = vst [vmem:[#allocation11 + $0xb8] sm:$0xff] 0.0
          %299 = vst [vmem:[#allocation11 + $0xc0] sm:$0xff] 0.0
          %300 = vst [vmem:[#allocation11 + $0xc8] sm:$0xff] 0.0
          %301 = vst [vmem:[#allocation11 + $0xd0] sm:$0xff] 0.0
          %302 = vst [vmem:[#allocation11 + $0xd8] sm:$0xff] 0.0
          %303 = vst [vmem:[#allocation11 + $0xe0] sm:$0xff] 0.0
          %304 = vst [vmem:[#allocation11 + $0xe8] sm:$0xff] 0.0
          %305 = vst [vmem:[#allocation11 + $0xf0] sm:$0xff] 0.0
          %306 = vst [vmem:[#allocation11 + $0xf8] sm:$0xff] 0.0
          %307 = vst [vmem:[#allocation11 + $0x100] sm:$0xff] 0.0
          %308 = vst [vmem:[#allocation11 + $0x108] sm:$0xff] 0.0
          %309 = vst [vmem:[#allocation11 + $0x110] sm:$0xff] 0.0
          %310 = vst [vmem:[#allocation11 + $0x118] sm:$0xff] 0.0
          %311 = vst [vmem:[#allocation11 + $0x120] sm:$0xff] 0.0
          %312 = vst [vmem:[#allocation11 + $0x128] sm:$0xff] 0.0
          %313 = vst [vmem:[#allocation11 + $0x130] sm:$0xff] 0.0
          %314 = vst [vmem:[#allocation11 + $0x138] sm:$0xff] 0.0
          %315 = vst [vmem:[#allocation11 + $0x140] sm:$0xff] 0.0
          %316 = vst [vmem:[#allocation11 + $0x148] sm:$0xff] 0.0
          %317 = vst [vmem:[#allocation11 + $0x150] sm:$0xff] 0.0
          %318 = vst [vmem:[#allocation11 + $0x158] sm:$0xff] 0.0
          %319 = vst [vmem:[#allocation11 + $0x160] sm:$0xff] 0.0
          %320 = vst [vmem:[#allocation11 + $0x168] sm:$0xff] 0.0
          %321 = vst [vmem:[#allocation11 + $0x170] sm:$0xff] 0.0
          %322 = vst [vmem:[#allocation11 + $0x178] sm:$0xff] 0.0
          %323 = vst [vmem:[#allocation11 + $0x180] sm:$0xff] 0.0
          %324 = vst [vmem:[#allocation11 + $0x188] sm:$0xff] 0.0
          %325 = vst [vmem:[#allocation11 + $0x190] sm:$0xff] 0.0
          %326 = vst [vmem:[#allocation11 + $0x198] sm:$0xff] 0.0
          %327 = vst [vmem:[#allocation11 + $0x1a0] sm:$0xff] 0.0
          %328 = vst [vmem:[#allocation11 + $0x1a8] sm:$0xff] 0.0
          %329 = vst [vmem:[#allocation11 + $0x1b0] sm:$0xff] 0.0
          %330 = vst [vmem:[#allocation11 + $0x1b8] sm:$0xff] 0.0
          %331 = vst [vmem:[#allocation11 + $0x1c0] sm:$0xff] 0.0
          %332 = vst [vmem:[#allocation11 + $0x1c8] sm:$0xff] 0.0
          %333 = vst [vmem:[#allocation11 + $0x1d0] sm:$0xff] 0.0
          %334 = vst [vmem:[#allocation11 + $0x1d8] sm:$0xff] 0.0
          %335 = vst [vmem:[#allocation11 + $0x1e0] sm:$0xff] 0.0
          %336 = vst [vmem:[#allocation11 + $0x1e8] sm:$0xff] 0.0
          %337 = vst [vmem:[#allocation11 + $0x1f0] sm:$0xff] 0.0
          %338 = vst [vmem:[#allocation11 + $0x1f8] sm:$0xff] 0.0
          %339 = vst [vmem:[#allocation11 + $0x200] sm:$0xff] 0.0
          %340 = vst [vmem:[#allocation11 + $0x208] sm:$0xff] 0.0
          %341 = vst [vmem:[#allocation11 + $0x210] sm:$0xff] 0.0
          %342 = vst [vmem:[#allocation11 + $0x218] sm:$0xff] 0.0
          %343 = vst [vmem:[#allocation11 + $0x220] sm:$0xff] 0.0
          %344 = vst [vmem:[#allocation11 + $0x228] sm:$0xff] 0.0
          %345 = vst [vmem:[#allocation11 + $0x230] sm:$0xff] 0.0
          %346 = vst [vmem:[#allocation11 + $0x238] sm:$0xff] 0.0
          %347 = vst [vmem:[#allocation11 + $0x240] sm:$0xff] 0.0
          %348 = vst [vmem:[#allocation11 + $0x248] sm:$0xff] 0.0
          %349 = vst [vmem:[#allocation11 + $0x250] sm:$0xff] 0.0
          %350 = vst [vmem:[#allocation11 + $0x258] sm:$0xff] 0.0
          %351 = vst [vmem:[#allocation11 + $0x260] sm:$0xff] 0.0
          %352 = vst [vmem:[#allocation11 + $0x268] sm:$0xff] 0.0
          %353 = vst [vmem:[#allocation11 + $0x270] sm:$0xff] 0.0
          %354 = vst [vmem:[#allocation11 + $0x278] sm:$0xff] 0.0
          %355 = vst [vmem:[#allocation11 + $0x280] sm:$0xff] 0.0
          %356 = vst [vmem:[#allocation11 + $0x288] sm:$0xff] 0.0
          %357 = vst [vmem:[#allocation11 + $0x290] sm:$0xff] 0.0
          %358 = vst [vmem:[#allocation11 + $0x298] sm:$0xff] 0.0
          %359 = vst [vmem:[#allocation11 + $0x2a0] sm:$0xff] 0.0
          %360 = vst [vmem:[#allocation11 + $0x2a8] sm:$0xff] 0.0
          %361 = vst [vmem:[#allocation11 + $0x2b0] sm:$0xff] 0.0
          %362 = vst [vmem:[#allocation11 + $0x2b8] sm:$0xff] 0.0
          %363 = vst [vmem:[#allocation11 + $0x2c0] sm:$0xff] 0.0
          %364 = vst [vmem:[#allocation11 + $0x2c8] sm:$0xff] 0.0
          %365 = vst [vmem:[#allocation11 + $0x2d0] sm:$0xff] 0.0
          %366 = vst [vmem:[#allocation11 + $0x2d8] sm:$0xff] 0.0
          %367 = vst [vmem:[#allocation11 + $0x2e0] sm:$0xff] 0.0
          %368 = vst [vmem:[#allocation11 + $0x2e8] sm:$0xff] 0.0
          %369 = vst [vmem:[#allocation11 + $0x2f0] sm:$0xff] 0.0
          %370 = vst [vmem:[#allocation11 + $0x2f8] sm:$0xff] 0.0
        $region48: #{tpu_custom_call.1} parent=31 // pred_fallthru
          _
        // Predicated region
        $region49: #{tpu_custom_call.1} parent=31 // pred_check
          %p371 = pneg %p270
        $region50: #{tpu_custom_call.1} parent=31 // pred_check_branch
          %373 = sbr.rel (%p371) target = $region52
        $region51: #{tpu_custom_call.1} parent=31 // pred_region
          %374 = vst [vmem:[#allocation10] sm:$0xff] 0.0
          %375 = vst [vmem:[#allocation10 + $0x8] sm:$0xff] 0.0
          %376 = vst [vmem:[#allocation10 + $0x10] sm:$0xff] 0.0
          %377 = vst [vmem:[#allocation10 + $0x18] sm:$0xff] 0.0
          %378 = vst [vmem:[#allocation10 + $0x20] sm:$0xff] 0.0
          %379 = vst [vmem:[#allocation10 + $0x28] sm:$0xff] 0.0
          %380 = vst [vmem:[#allocation10 + $0x30] sm:$0xff] 0.0
          %381 = vst [vmem:[#allocation10 + $0x38] sm:$0xff] 0.0
          %382 = vst [vmem:[#allocation10 + $0x40] sm:$0xff] 0.0
          %383 = vst [vmem:[#allocation10 + $0x48] sm:$0xff] 0.0
          %384 = vst [vmem:[#allocation10 + $0x50] sm:$0xff] 0.0
          %385 = vst [vmem:[#allocation10 + $0x58] sm:$0xff] 0.0
          %386 = vst [vmem:[#allocation10 + $0x60] sm:$0xff] 0.0
          %387 = vst [vmem:[#allocation10 + $0x68] sm:$0xff] 0.0
          %388 = vst [vmem:[#allocation10 + $0x70] sm:$0xff] 0.0
          %389 = vst [vmem:[#allocation10 + $0x78] sm:$0xff] 0.0
          %390 = vst [vmem:[#allocation10 + $0x80] sm:$0xff] 0.0
          %391 = vst [vmem:[#allocation10 + $0x88] sm:$0xff] 0.0
          %392 = vst [vmem:[#allocation10 + $0x90] sm:$0xff] 0.0
          %393 = vst [vmem:[#allocation10 + $0x98] sm:$0xff] 0.0
          %394 = vst [vmem:[#allocation10 + $0xa0] sm:$0xff] 0.0
          %395 = vst [vmem:[#allocation10 + $0xa8] sm:$0xff] 0.0
          %396 = vst [vmem:[#allocation10 + $0xb0] sm:$0xff] 0.0
          %397 = vst [vmem:[#allocation10 + $0xb8] sm:$0xff] 0.0
          %398 = vst [vmem:[#allocation10 + $0xc0] sm:$0xff] 0.0
          %399 = vst [vmem:[#allocation10 + $0xc8] sm:$0xff] 0.0
          %400 = vst [vmem:[#allocation10 + $0xd0] sm:$0xff] 0.0
          %401 = vst [vmem:[#allocation10 + $0xd8] sm:$0xff] 0.0
          %402 = vst [vmem:[#allocation10 + $0xe0] sm:$0xff] 0.0
          %403 = vst [vmem:[#allocation10 + $0xe8] sm:$0xff] 0.0
          %404 = vst [vmem:[#allocation10 + $0xf0] sm:$0xff] 0.0
          %405 = vst [vmem:[#allocation10 + $0xf8] sm:$0xff] 0.0
          %406 = vst [vmem:[#allocation10 + $0x100] sm:$0xff] 0.0
          %407 = vst [vmem:[#allocation10 + $0x108] sm:$0xff] 0.0
          %408 = vst [vmem:[#allocation10 + $0x110] sm:$0xff] 0.0
          %409 = vst [vmem:[#allocation10 + $0x118] sm:$0xff] 0.0
          %410 = vst [vmem:[#allocation10 + $0x120] sm:$0xff] 0.0
          %411 = vst [vmem:[#allocation10 + $0x128] sm:$0xff] 0.0
          %412 = vst [vmem:[#allocation10 + $0x130] sm:$0xff] 0.0
          %413 = vst [vmem:[#allocation10 + $0x138] sm:$0xff] 0.0
          %414 = vst [vmem:[#allocation10 + $0x140] sm:$0xff] 0.0
          %415 = vst [vmem:[#allocation10 + $0x148] sm:$0xff] 0.0
          %416 = vst [vmem:[#allocation10 + $0x150] sm:$0xff] 0.0
          %417 = vst [vmem:[#allocation10 + $0x158] sm:$0xff] 0.0
          %418 = vst [vmem:[#allocation10 + $0x160] sm:$0xff] 0.0
          %419 = vst [vmem:[#allocation10 + $0x168] sm:$0xff] 0.0
          %420 = vst [vmem:[#allocation10 + $0x170] sm:$0xff] 0.0
          %421 = vst [vmem:[#allocation10 + $0x178] sm:$0xff] 0.0
          %422 = vst [vmem:[#allocation10 + $0x180] sm:$0xff] 0.0
          %423 = vst [vmem:[#allocation10 + $0x188] sm:$0xff] 0.0
          %424 = vst [vmem:[#allocation10 + $0x190] sm:$0xff] 0.0
          %425 = vst [vmem:[#allocation10 + $0x198] sm:$0xff] 0.0
          %426 = vst [vmem:[#allocation10 + $0x1a0] sm:$0xff] 0.0
          %427 = vst [vmem:[#allocation10 + $0x1a8] sm:$0xff] 0.0
          %428 = vst [vmem:[#allocation10 + $0x1b0] sm:$0xff] 0.0
          %429 = vst [vmem:[#allocation10 + $0x1b8] sm:$0xff] 0.0
          %430 = vst [vmem:[#allocation10 + $0x1c0] sm:$0xff] 0.0
          %431 = vst [vmem:[#allocation10 + $0x1c8] sm:$0xff] 0.0
          %432 = vst [vmem:[#allocation10 + $0x1d0] sm:$0xff] 0.0
          %433 = vst [vmem:[#allocation10 + $0x1d8] sm:$0xff] 0.0
          %434 = vst [vmem:[#allocation10 + $0x1e0] sm:$0xff] 0.0
          %435 = vst [vmem:[#allocation10 + $0x1e8] sm:$0xff] 0.0
          %436 = vst [vmem:[#allocation10 + $0x1f0] sm:$0xff] 0.0
          %437 = vst [vmem:[#allocation10 + $0x1f8] sm:$0xff] 0.0
        $region52: #{tpu_custom_call.1} parent=31 // pred_fallthru
          _
        %v438 = vld [vmem:[%s236] sm:$0xff]
        %v439 = vld [vmem:[%s236 + $0x8] sm:$0xff]
        %v440 = vld [vmem:[%s236 + $0x10] sm:$0xff]
        %v441 = vld [vmem:[%s236 + $0x18] sm:$0xff]
        %v442 = vld [vmem:[%s236 + $0x20] sm:$0xff]
        %v443 = vld [vmem:[%s236 + $0x28] sm:$0xff]
        %v444 = vld [vmem:[%s236 + $0x30] sm:$0xff]
        %v445 = vld [vmem:[%s236 + $0x38] sm:$0xff]
        %v446 = vld [vmem:[%s236 + $0x40] sm:$0xff]
        %v447 = vld [vmem:[%s236 + $0x48] sm:$0xff]
        %v448 = vld [vmem:[%s236 + $0x50] sm:$0xff]
        %v449 = vld [vmem:[%s236 + $0x58] sm:$0xff]
        %v450 = vld [vmem:[%s236 + $0x60] sm:$0xff]
        %v451 = vld [vmem:[%s236 + $0x68] sm:$0xff]
        %v452 = vld [vmem:[%s236 + $0x70] sm:$0xff]
        %v453 = vld [vmem:[%s236 + $0x78] sm:$0xff]
        %v454 = vld [vmem:[%s236 + $0x80] sm:$0xff]
        %v455 = vld [vmem:[%s236 + $0x88] sm:$0xff]
        %v456 = vld [vmem:[%s236 + $0x90] sm:$0xff]
        %v457 = vld [vmem:[%s236 + $0x98] sm:$0xff]
        %v458 = vld [vmem:[%s236 + $0xa0] sm:$0xff]
        %v459 = vld [vmem:[%s236 + $0xa8] sm:$0xff]
        %v460 = vld [vmem:[%s236 + $0xb0] sm:$0xff]
        %v461 = vld [vmem:[%s236 + $0xb8] sm:$0xff]
        %v462 = vld [vmem:[%s236 + $0xc0] sm:$0xff]
        %v463 = vld [vmem:[%s236 + $0xc8] sm:$0xff]
        %v464 = vld [vmem:[%s236 + $0xd0] sm:$0xff]
        %v465 = vld [vmem:[%s236 + $0xd8] sm:$0xff]
        %v466 = vld [vmem:[%s236 + $0xe0] sm:$0xff]
        %v467 = vld [vmem:[%s236 + $0xe8] sm:$0xff]
        %v468 = vld [vmem:[%s236 + $0xf0] sm:$0xff]
        %v469 = vld [vmem:[%s236 + $0xf8] sm:$0xff]
        %v470 = vld [vmem:[%s236 + $0x100] sm:$0xff]
        %v471 = vld [vmem:[%s236 + $0x108] sm:$0xff]
        %v472 = vld [vmem:[%s236 + $0x110] sm:$0xff]
        %v473 = vld [vmem:[%s236 + $0x118] sm:$0xff]
        %v474 = vld [vmem:[%s236 + $0x120] sm:$0xff]
        %v475 = vld [vmem:[%s236 + $0x128] sm:$0xff]
        %v476 = vld [vmem:[%s236 + $0x130] sm:$0xff]
        %v477 = vld [vmem:[%s236 + $0x138] sm:$0xff]
        %v478 = vld [vmem:[%s236 + $0x140] sm:$0xff]
        %v479 = vld [vmem:[%s236 + $0x148] sm:$0xff]
        %v480 = vld [vmem:[%s236 + $0x150] sm:$0xff]
        %v481 = vld [vmem:[%s236 + $0x158] sm:$0xff]
        %v482 = vld [vmem:[%s236 + $0x160] sm:$0xff]
        %v483 = vld [vmem:[%s236 + $0x168] sm:$0xff]
        %v484 = vld [vmem:[%s236 + $0x170] sm:$0xff]
        %v485 = vld [vmem:[%s236 + $0x178] sm:$0xff]
        %v486 = vld [vmem:[%s236 + $0x180] sm:$0xff]
        %v487 = vld [vmem:[%s236 + $0x188] sm:$0xff]
        %v488 = vld [vmem:[%s236 + $0x190] sm:$0xff]
        %v489 = vld [vmem:[%s236 + $0x198] sm:$0xff]
        %v490 = vld [vmem:[%s236 + $0x1a0] sm:$0xff]
        %v491 = vld [vmem:[%s236 + $0x1a8] sm:$0xff]
        %v492 = vld [vmem:[%s236 + $0x1b0] sm:$0xff]
        %v493 = vld [vmem:[%s236 + $0x1b8] sm:$0xff]
        %v494 = vld [vmem:[%s236 + $0x1c0] sm:$0xff]
        %v495 = vld [vmem:[%s236 + $0x1c8] sm:$0xff]
        %v496 = vld [vmem:[%s236 + $0x1d0] sm:$0xff]
        %v497 = vld [vmem:[%s236 + $0x1d8] sm:$0xff]
        %v498 = vld [vmem:[%s236 + $0x1e0] sm:$0xff]
        %v499 = vld [vmem:[%s236 + $0x1e8] sm:$0xff]
        %v500 = vld [vmem:[%s236 + $0x1f0] sm:$0xff]
        %v501 = vld [vmem:[%s236 + $0x1f8] sm:$0xff]
        %s502 = smul.u32 %s29, 256
        %s503 = sshra.s32 %s502, 3
        %s504 = sand.u32 %s502, 7
        %s505 = smul.addr %s503, 4
        %s506 = scalar_lea.vmem [#allocation7], %s505
        %v507 = vld [vmem:[%s506] sm:$0xf]
        %v508 = vld [vmem:[%s506 + $0x4] sm:$0xf]
        %v509 = vld [vmem:[%s506 + $0x8] sm:$0xf]
        %v510 = vld [vmem:[%s506 + $0xc] sm:$0xf]
        %v511 = vld [vmem:[%s506 + $0x10] sm:$0xf]
        %v512 = vld [vmem:[%s506 + $0x14] sm:$0xf]
        %v513 = vld [vmem:[%s506 + $0x18] sm:$0xf]
        %v514 = vld [vmem:[%s506 + $0x1c] sm:$0xf]
        %v515 = vld [vmem:[%s506 + $0x20] sm:$0xf]
        %v516 = vld [vmem:[%s506 + $0x24] sm:$0xf]
        %v517 = vld [vmem:[%s506 + $0x28] sm:$0xf]
        %v518 = vld [vmem:[%s506 + $0x2c] sm:$0xf]
        %v519 = vld [vmem:[%s506 + $0x30] sm:$0xf]
        %v520 = vld [vmem:[%s506 + $0x34] sm:$0xf]
        %v521 = vld [vmem:[%s506 + $0x38] sm:$0xf]
        %v522 = vld [vmem:[%s506 + $0x3c] sm:$0xf]
        %v523 = vld [vmem:[%s506 + $0x40] sm:$0xf]
        %v524 = vld [vmem:[%s506 + $0x44] sm:$0xf]
        %v525 = vld [vmem:[%s506 + $0x48] sm:$0xf]
        %v526 = vld [vmem:[%s506 + $0x4c] sm:$0xf]
        %v527 = vld [vmem:[%s506 + $0x50] sm:$0xf]
        %v528 = vld [vmem:[%s506 + $0x54] sm:$0xf]
        %v529 = vld [vmem:[%s506 + $0x58] sm:$0xf]
        %v530 = vld [vmem:[%s506 + $0x5c] sm:$0xf]
        %v531 = vld [vmem:[%s506 + $0x60] sm:$0xf]
        %v532 = vld [vmem:[%s506 + $0x64] sm:$0xf]
        %v533 = vld [vmem:[%s506 + $0x68] sm:$0xf]
        %v534 = vld [vmem:[%s506 + $0x6c] sm:$0xf]
        %v535 = vld [vmem:[%s506 + $0x70] sm:$0xf]
        %v536 = vld [vmem:[%s506 + $0x74] sm:$0xf]
        %v537 = vld [vmem:[%s506 + $0x78] sm:$0xf]
        %v538 = vld [vmem:[%s506 + $0x7c] sm:$0xf]
        %v539 = vld [vmem:[#allocation10] sm:$0xff]
        %v540 = vld [vmem:[#allocation10 + $0x8] sm:$0xff]
        %v541 = vld [vmem:[#allocation10 + $0x10] sm:$0xff]
        %v542 = vld [vmem:[#allocation10 + $0x18] sm:$0xff]
        %v543 = vld [vmem:[#allocation10 + $0x20] sm:$0xff]
        %v544 = vld [vmem:[#allocation10 + $0x28] sm:$0xff]
        %v545 = vld [vmem:[#allocation10 + $0x30] sm:$0xff]
        %v546 = vld [vmem:[#allocation10 + $0x38] sm:$0xff]
        %v547 = vld [vmem:[#allocation10 + $0x40] sm:$0xff]
        %v548 = vld [vmem:[#allocation10 + $0x48] sm:$0xff]
        %v549 = vld [vmem:[#allocation10 + $0x50] sm:$0xff]
        %v550 = vld [vmem:[#allocation10 + $0x58] sm:$0xff]
        %v551 = vld [vmem:[#allocation10 + $0x60] sm:$0xff]
        %v552 = vld [vmem:[#allocation10 + $0x68] sm:$0xff]
        %v553 = vld [vmem:[#allocation10 + $0x70] sm:$0xff]
        %v554 = vld [vmem:[#allocation10 + $0x78] sm:$0xff]
        %v555 = vld [vmem:[#allocation10 + $0x80] sm:$0xff]
        %v556 = vld [vmem:[#allocation10 + $0x88] sm:$0xff]
        %v557 = vld [vmem:[#allocation10 + $0x90] sm:$0xff]
        %v558 = vld [vmem:[#allocation10 + $0x98] sm:$0xff]
        %v559 = vld [vmem:[#allocation10 + $0xa0] sm:$0xff]
        %v560 = vld [vmem:[#allocation10 + $0xa8] sm:$0xff]
        %v561 = vld [vmem:[#allocation10 + $0xb0] sm:$0xff]
        %v562 = vld [vmem:[#allocation10 + $0xb8] sm:$0xff]
        %v563 = vld [vmem:[#allocation10 + $0xc0] sm:$0xff]
        %v564 = vld [vmem:[#allocation10 + $0xc8] sm:$0xff]
        %v565 = vld [vmem:[#allocation10 + $0xd0] sm:$0xff]
        %v566 = vld [vmem:[#allocation10 + $0xd8] sm:$0xff]
        %v567 = vld [vmem:[#allocation10 + $0xe0] sm:$0xff]
        %v568 = vld [vmem:[#allocation10 + $0xe8] sm:$0xff]
        %v569 = vld [vmem:[#allocation10 + $0xf0] sm:$0xff]
        %v570 = vld [vmem:[#allocation10 + $0xf8] sm:$0xff]
        %v571 = vld [vmem:[#allocation10 + $0x100] sm:$0xff]
        %v572 = vld [vmem:[#allocation10 + $0x108] sm:$0xff]
        %v573 = vld [vmem:[#allocation10 + $0x110] sm:$0xff]
        %v574 = vld [vmem:[#allocation10 + $0x118] sm:$0xff]
        %v575 = vld [vmem:[#allocation10 + $0x120] sm:$0xff]
        %v576 = vld [vmem:[#allocation10 + $0x128] sm:$0xff]
        %v577 = vld [vmem:[#allocation10 + $0x130] sm:$0xff]
        %v578 = vld [vmem:[#allocation10 + $0x138] sm:$0xff]
        %v579 = vld [vmem:[#allocation10 + $0x140] sm:$0xff]
        %v580 = vld [vmem:[#allocation10 + $0x148] sm:$0xff]
        %v581 = vld [vmem:[#allocation10 + $0x150] sm:$0xff]
        %v582 = vld [vmem:[#allocation10 + $0x158] sm:$0xff]
        %v583 = vld [vmem:[#allocation10 + $0x160] sm:$0xff]
        %v584 = vld [vmem:[#allocation10 + $0x168] sm:$0xff]
        %v585 = vld [vmem:[#allocation10 + $0x170] sm:$0xff]
        %v586 = vld [vmem:[#allocation10 + $0x178] sm:$0xff]
        %v587 = vld [vmem:[#allocation10 + $0x180] sm:$0xff]
        %v588 = vld [vmem:[#allocation10 + $0x188] sm:$0xff]
        %v589 = vld [vmem:[#allocation10 + $0x190] sm:$0xff]
        %v590 = vld [vmem:[#allocation10 + $0x198] sm:$0xff]
        %v591 = vld [vmem:[#allocation10 + $0x1a0] sm:$0xff]
        %v592 = vld [vmem:[#allocation10 + $0x1a8] sm:$0xff]
        %v593 = vld [vmem:[#allocation10 + $0x1b0] sm:$0xff]
        %v594 = vld [vmem:[#allocation10 + $0x1b8] sm:$0xff]
        %v595 = vld [vmem:[#allocation10 + $0x1c0] sm:$0xff]
        %v596 = vld [vmem:[#allocation10 + $0x1c8] sm:$0xff]
        %v597 = vld [vmem:[#allocation10 + $0x1d0] sm:$0xff]
        %v598 = vld [vmem:[#allocation10 + $0x1d8] sm:$0xff]
        %v599 = vld [vmem:[#allocation10 + $0x1e0] sm:$0xff]
        %v600 = vld [vmem:[#allocation10 + $0x1e8] sm:$0xff]
        %v601 = vld [vmem:[#allocation10 + $0x1f0] sm:$0xff]
        %v602 = vld [vmem:[#allocation10 + $0x1f8] sm:$0xff]
        %v667 = vunpack.c.l.b16 %v438
        %v668 = vunpack.c.h.b16 %v438
        %v669 = vunpack.c.l.b16 %v439
        %v670 = vunpack.c.h.b16 %v439
        %v671 = vunpack.c.l.b16 %v440
        %v672 = vunpack.c.h.b16 %v440
        %v673 = vunpack.c.l.b16 %v441
        %v674 = vunpack.c.h.b16 %v441
        %v675 = vunpack.c.l.b16 %v442
        %v676 = vunpack.c.h.b16 %v442
        %v677 = vunpack.c.l.b16 %v443
        %v678 = vunpack.c.h.b16 %v443
        %v679 = vunpack.c.l.b16 %v444
        %v680 = vunpack.c.h.b16 %v444
        %v681 = vunpack.c.l.b16 %v445
        %v682 = vunpack.c.h.b16 %v445
        %v683 = vunpack.c.l.b16 %v446
        %v684 = vunpack.c.h.b16 %v446
        %v685 = vunpack.c.l.b16 %v447
        %v686 = vunpack.c.h.b16 %v447
        %v687 = vunpack.c.l.b16 %v448
        %v688 = vunpack.c.h.b16 %v448
        %v689 = vunpack.c.l.b16 %v449
        %v690 = vunpack.c.h.b16 %v449
        %v691 = vunpack.c.l.b16 %v450
        %v692 = vunpack.c.h.b16 %v450
        %v693 = vunpack.c.l.b16 %v451
        %v694 = vunpack.c.h.b16 %v451
        %v695 = vunpack.c.l.b16 %v452
        %v696 = vunpack.c.h.b16 %v452
        %v697 = vunpack.c.l.b16 %v453
        %v698 = vunpack.c.h.b16 %v453
        %v699 = vunpack.c.l.b16 %v454
        %v700 = vunpack.c.h.b16 %v454
        %v701 = vunpack.c.l.b16 %v455
        %v702 = vunpack.c.h.b16 %v455
        %v703 = vunpack.c.l.b16 %v456
        %v704 = vunpack.c.h.b16 %v456
        %v705 = vunpack.c.l.b16 %v457
        %v706 = vunpack.c.h.b16 %v457
        %v707 = vunpack.c.l.b16 %v458
        %v708 = vunpack.c.h.b16 %v458
        %v709 = vunpack.c.l.b16 %v459
        %v710 = vunpack.c.h.b16 %v459
        %v711 = vunpack.c.l.b16 %v460
        %v712 = vunpack.c.h.b16 %v460
        %v713 = vunpack.c.l.b16 %v461
        %v714 = vunpack.c.h.b16 %v461
        %v715 = vunpack.c.l.b16 %v462
        %v716 = vunpack.c.h.b16 %v462
        %v717 = vunpack.c.l.b16 %v463
        %v718 = vunpack.c.h.b16 %v463
        %v719 = vunpack.c.l.b16 %v464
        %v720 = vunpack.c.h.b16 %v464
        %v721 = vunpack.c.l.b16 %v465
        %v722 = vunpack.c.h.b16 %v465
        %v723 = vunpack.c.l.b16 %v466
        %v724 = vunpack.c.h.b16 %v466
        %v725 = vunpack.c.l.b16 %v467
        %v726 = vunpack.c.h.b16 %v467
        %v727 = vunpack.c.l.b16 %v468
        %v728 = vunpack.c.h.b16 %v468
        %v729 = vunpack.c.l.b16 %v469
        %v730 = vunpack.c.h.b16 %v469
        %v731 = vunpack.c.l.b16 %v470
        %v732 = vunpack.c.h.b16 %v470
        %v733 = vunpack.c.l.b16 %v471
        %v734 = vunpack.c.h.b16 %v471
        %v735 = vunpack.c.l.b16 %v472
        %v736 = vunpack.c.h.b16 %v472
        %v737 = vunpack.c.l.b16 %v473
        %v738 = vunpack.c.h.b16 %v473
        %v739 = vunpack.c.l.b16 %v474
        %v740 = vunpack.c.h.b16 %v474
        %v741 = vunpack.c.l.b16 %v475
        %v742 = vunpack.c.h.b16 %v475
        %v743 = vunpack.c.l.b16 %v476
        %v744 = vunpack.c.h.b16 %v476
        %v745 = vunpack.c.l.b16 %v477
        %v746 = vunpack.c.h.b16 %v477
        %v747 = vunpack.c.l.b16 %v478
        %v748 = vunpack.c.h.b16 %v478
        %v749 = vunpack.c.l.b16 %v479
        %v750 = vunpack.c.h.b16 %v479
        %v751 = vunpack.c.l.b16 %v480
        %v752 = vunpack.c.h.b16 %v480
        %v753 = vunpack.c.l.b16 %v481
        %v754 = vunpack.c.h.b16 %v481
        %v755 = vunpack.c.l.b16 %v482
        %v756 = vunpack.c.h.b16 %v482
        %v757 = vunpack.c.l.b16 %v483
        %v758 = vunpack.c.h.b16 %v483
        %v759 = vunpack.c.l.b16 %v484
        %v760 = vunpack.c.h.b16 %v484
        %v761 = vunpack.c.l.b16 %v485
        %v762 = vunpack.c.h.b16 %v485
        %v763 = vunpack.c.l.b16 %v486
        %v764 = vunpack.c.h.b16 %v486
        %v765 = vunpack.c.l.b16 %v487
        %v766 = vunpack.c.h.b16 %v487
        %v767 = vunpack.c.l.b16 %v488
        %v768 = vunpack.c.h.b16 %v488
        %v769 = vunpack.c.l.b16 %v489
        %v770 = vunpack.c.h.b16 %v489
        %v771 = vunpack.c.l.b16 %v490
        %v772 = vunpack.c.h.b16 %v490
        %v773 = vunpack.c.l.b16 %v491
        %v774 = vunpack.c.h.b16 %v491
        %v775 = vunpack.c.l.b16 %v492
        %v776 = vunpack.c.h.b16 %v492
        %v777 = vunpack.c.l.b16 %v493
        %v778 = vunpack.c.h.b16 %v493
        %v779 = vunpack.c.l.b16 %v494
        %v780 = vunpack.c.h.b16 %v494
        %v781 = vunpack.c.l.b16 %v495
        %v782 = vunpack.c.h.b16 %v495
        %v783 = vunpack.c.l.b16 %v496
        %v784 = vunpack.c.h.b16 %v496
        %v785 = vunpack.c.l.b16 %v497
        %v786 = vunpack.c.h.b16 %v497
        %v787 = vunpack.c.l.b16 %v498
        %v788 = vunpack.c.h.b16 %v498
        %v789 = vunpack.c.l.b16 %v499
        %v790 = vunpack.c.h.b16 %v499
        %v791 = vunpack.c.l.b16 %v500
        %v792 = vunpack.c.h.b16 %v500
        %v793 = vunpack.c.l.b16 %v501
        %v794 = vunpack.c.h.b16 %v501
        %v795 = vpack.c.b16 %v669, %v667
        %v796 = vpack.c.b16 %v670, %v668
        %v797 = vpack.c.b16 %v673, %v671
        %v798 = vpack.c.b16 %v674, %v672
        %v799 = vpack.c.b16 %v677, %v675
        %v800 = vpack.c.b16 %v678, %v676
        %v801 = vpack.c.b16 %v681, %v679
        %v802 = vpack.c.b16 %v682, %v680
        %v803 = vpack.c.b16 %v685, %v683
        %v804 = vpack.c.b16 %v686, %v684
        %v805 = vpack.c.b16 %v689, %v687
        %v806 = vpack.c.b16 %v690, %v688
        %v807 = vpack.c.b16 %v693, %v691
        %v808 = vpack.c.b16 %v694, %v692
        %v809 = vpack.c.b16 %v697, %v695
        %v810 = vpack.c.b16 %v698, %v696
        %v811 = vpack.c.b16 %v701, %v699
        %v812 = vpack.c.b16 %v702, %v700
        %v813 = vpack.c.b16 %v705, %v703
        %v814 = vpack.c.b16 %v706, %v704
        %v815 = vpack.c.b16 %v709, %v707
        %v816 = vpack.c.b16 %v710, %v708
        %v817 = vpack.c.b16 %v713, %v711
        %v818 = vpack.c.b16 %v714, %v712
        %v819 = vpack.c.b16 %v717, %v715
        %v820 = vpack.c.b16 %v718, %v716
        %v821 = vpack.c.b16 %v721, %v719
        %v822 = vpack.c.b16 %v722, %v720
        %v823 = vpack.c.b16 %v725, %v723
        %v824 = vpack.c.b16 %v726, %v724
        %v825 = vpack.c.b16 %v729, %v727
        %v826 = vpack.c.b16 %v730, %v728
        %v827 = vpack.c.b16 %v733, %v731
        %v828 = vpack.c.b16 %v734, %v732
        %v829 = vpack.c.b16 %v737, %v735
        %v830 = vpack.c.b16 %v738, %v736
        %v831 = vpack.c.b16 %v741, %v739
        %v832 = vpack.c.b16 %v742, %v740
        %v833 = vpack.c.b16 %v745, %v743
        %v834 = vpack.c.b16 %v746, %v744
        %v835 = vpack.c.b16 %v749, %v747
        %v836 = vpack.c.b16 %v750, %v748
        %v837 = vpack.c.b16 %v753, %v751
        %v838 = vpack.c.b16 %v754, %v752
        %v839 = vpack.c.b16 %v757, %v755
        %v840 = vpack.c.b16 %v758, %v756
        %v841 = vpack.c.b16 %v761, %v759
        %v842 = vpack.c.b16 %v762, %v760
        %v843 = vpack.c.b16 %v765, %v763
        %v844 = vpack.c.b16 %v766, %v764
        %v845 = vpack.c.b16 %v769, %v767
        %v846 = vpack.c.b16 %v770, %v768
        %v847 = vpack.c.b16 %v773, %v771
        %v848 = vpack.c.b16 %v774, %v772
        %v849 = vpack.c.b16 %v777, %v775
        %v850 = vpack.c.b16 %v778, %v776
        %v851 = vpack.c.b16 %v781, %v779
        %v852 = vpack.c.b16 %v782, %v780
        %v853 = vpack.c.b16 %v785, %v783
        %v854 = vpack.c.b16 %v786, %v784
        %v855 = vpack.c.b16 %v789, %v787
        %v856 = vpack.c.b16 %v790, %v788
        %v857 = vpack.c.b16 %v793, %v791
        %v858 = vpack.c.b16 %v794, %v792
        %v955 = vunpack.c.l.b16 %v507
        %v956 = vunpack.c.l.b16 %v508
        %v957 = vunpack.c.l.b16 %v509
        %v958 = vunpack.c.l.b16 %v510
        %v959 = vunpack.c.l.b16 %v511
        %v960 = vunpack.c.l.b16 %v512
        %v961 = vunpack.c.l.b16 %v513
        %v962 = vunpack.c.l.b16 %v514
        %v963 = vunpack.c.l.b16 %v515
        %v964 = vunpack.c.l.b16 %v516
        %v965 = vunpack.c.l.b16 %v517
        %v966 = vunpack.c.l.b16 %v518
        %v967 = vunpack.c.l.b16 %v519
        %v968 = vunpack.c.l.b16 %v520
        %v969 = vunpack.c.l.b16 %v521
        %v970 = vunpack.c.l.b16 %v522
        %v971 = vunpack.c.l.b16 %v523
        %v972 = vunpack.c.l.b16 %v524
        %v973 = vunpack.c.l.b16 %v525
        %v974 = vunpack.c.l.b16 %v526
        %v975 = vunpack.c.l.b16 %v527
        %v976 = vunpack.c.l.b16 %v528
        %v977 = vunpack.c.l.b16 %v529
        %v978 = vunpack.c.l.b16 %v530
        %v979 = vunpack.c.l.b16 %v531
        %v980 = vunpack.c.l.b16 %v532
        %v981 = vunpack.c.l.b16 %v533
        %v982 = vunpack.c.l.b16 %v534
        %v983 = vunpack.c.l.b16 %v535
        %v984 = vunpack.c.l.b16 %v536
        %v985 = vunpack.c.l.b16 %v537
        %v986 = vunpack.c.l.b16 %v538
        %v987 = vpack.c.b16 %v956, %v955
        %v988 = vpack.c.b16 %v958, %v957
        %v989 = vpack.c.b16 %v960, %v959
        %v990 = vpack.c.b16 %v962, %v961
        %v991 = vpack.c.b16 %v964, %v963
        %v992 = vpack.c.b16 %v966, %v965
        %v993 = vpack.c.b16 %v968, %v967
        %v994 = vpack.c.b16 %v970, %v969
        %v995 = vpack.c.b16 %v972, %v971
        %v996 = vpack.c.b16 %v974, %v973
        %v997 = vpack.c.b16 %v976, %v975
        %v998 = vpack.c.b16 %v978, %v977
        %v999 = vpack.c.b16 %v980, %v979
        %v1000 = vpack.c.b16 %v982, %v981
        %v1001 = vpack.c.b16 %v984, %v983
        %v1002 = vpack.c.b16 %v986, %v985
        %1019 = vmatprep.subr.bf16.mxu0 0
        %1020 = vmatpush1.bf16.msra.mxu0 %v994
        %1021 = vmatprep.subr.bf16.mxu0 0
        %1022 = vmatpush1.bf16.msra.mxu0 %v993
        %1023 = vmatprep.subr.bf16.mxu0 0
        %1024 = vmatpush1.bf16.msra.mxu0 %v992
        %1025 = vmatprep.subr.bf16.mxu0 0
        %1026 = vmatpush1.bf16.msra.mxu0 %v991
        %1027 = vmatprep.subr.bf16.mxu0 0
        %1028 = vmatpush1.bf16.msra.mxu0 %v990
        %1029 = vmatprep.subr.bf16.mxu0 0
        %1030 = vmatpush1.bf16.msra.mxu0 %v989
        %1031 = vmatprep.subr.bf16.mxu0 0
        %1032 = vmatpush1.bf16.msra.mxu0 %v988
        %1033 = vmatprep.subr.bf16.mxu0 0
        %1034 = vmatpush1.bf16.msra.mxu0 %v987
        %1035 = vmatprep.subr.bf16.mxu0 0
        %1036 = vmatpush2.bf16.msra.mxu0 %v1002
        %1037 = vmatprep.subr.bf16.mxu0 0
        %1038 = vmatpush2.bf16.msra.mxu0 %v1001
        %1039 = vmatprep.subr.bf16.mxu0 0
        %1040 = vmatpush2.bf16.msra.mxu0 %v1000
        %1041 = vmatprep.subr.bf16.mxu0 0
        %1042 = vmatpush2.bf16.msra.mxu0 %v999
        %1043 = vmatprep.subr.bf16.mxu0 0
        %1044 = vmatpush2.bf16.msra.mxu0 %v998
        %1045 = vmatprep.subr.bf16.mxu0 0
        %1046 = vmatpush2.bf16.msra.mxu0 %v997
        %1047 = vmatprep.subr.bf16.mxu0 0
        %1048 = vmatpush2.bf16.msra.mxu0 %v996
        %1049 = vmatprep.subr.bf16.mxu0 0
        %1050 = vmatpush2.bf16.msra.mxu0 %v995
        %1051 = vmatprep.mubr.bf16.mxu0 %v796
        %1052 = vmatmul.mubr.bf16.gmra.mxu0 %v795
        %v1053 = vpop.f32.mrf.mxu0
        %v1054 = vadd.f32 0.0, %v1053
        %v1055 = vpop.f32.mrf.mxu0
        %v1056 = vpop.f32.mrf.mxu0
        %v1057 = vadd.f32 0.0, %v1056
        %v1058 = vpop.f32.mrf.mxu0
        %1059 = vmatprep.mubr.bf16.mxu0 %v798
        %1060 = vmatmul.mubr.bf16.gmra.mxu0 %v797
        %v1061 = vpop.f32.mrf.mxu0
        %v1062 = vadd.f32 0.0, %v1061
        %v1063 = vpop.f32.mrf.mxu0
        %v1064 = vpop.f32.mrf.mxu0
        %v1065 = vadd.f32 0.0, %v1064
        %v1066 = vpop.f32.mrf.mxu0
        %1067 = vmatprep.mubr.bf16.mxu0 %v800
        %1068 = vmatmul.mubr.bf16.gmra.mxu0 %v799
        %v1069 = vpop.f32.mrf.mxu0
        %v1070 = vadd.f32 0.0, %v1069
        %v1071 = vpop.f32.mrf.mxu0
        %v1072 = vpop.f32.mrf.mxu0
        %v1073 = vadd.f32 0.0, %v1072
        %v1074 = vpop.f32.mrf.mxu0
        %1075 = vmatprep.mubr.bf16.mxu0 %v802
        %1076 = vmatmul.mubr.bf16.gmra.mxu0 %v801
        %v1077 = vpop.f32.mrf.mxu0
        %v1078 = vadd.f32 0.0, %v1077
        %v1079 = vpop.f32.mrf.mxu0
        %v1080 = vpop.f32.mrf.mxu0
        %v1081 = vadd.f32 0.0, %v1080
        %v1082 = vpop.f32.mrf.mxu0
        %1083 = vmatprep.mubr.bf16.mxu0 %v804
        %1084 = vmatmul.mubr.bf16.gmra.mxu0 %v803
        %v1085 = vpop.f32.mrf.mxu0
        %v1086 = vadd.f32 0.0, %v1085
        %v1087 = vpop.f32.mrf.mxu0
        %v1088 = vpop.f32.mrf.mxu0
        %v1089 = vadd.f32 0.0, %v1088
        %v1090 = vpop.f32.mrf.mxu0
        %1091 = vmatprep.mubr.bf16.mxu0 %v806
        %1092 = vmatmul.mubr.bf16.gmra.mxu0 %v805
        %v1093 = vpop.f32.mrf.mxu0
        %v1094 = vadd.f32 0.0, %v1093
        %v1095 = vpop.f32.mrf.mxu0
        %v1096 = vpop.f32.mrf.mxu0
        %v1097 = vadd.f32 0.0, %v1096
        %v1098 = vpop.f32.mrf.mxu0
        %1099 = vmatprep.mubr.bf16.mxu0 %v808
        %1100 = vmatmul.mubr.bf16.gmra.mxu0 %v807
        %v1101 = vpop.f32.mrf.mxu0
        %v1102 = vadd.f32 0.0, %v1101
        %v1103 = vpop.f32.mrf.mxu0
        %v1104 = vpop.f32.mrf.mxu0
        %v1105 = vadd.f32 0.0, %v1104
        %v1106 = vpop.f32.mrf.mxu0
        %1107 = vmatprep.mubr.bf16.mxu0 %v810
        %1108 = vmatmul.mubr.bf16.gmra.mxu0 %v809
        %v1109 = vpop.f32.mrf.mxu0
        %v1110 = vadd.f32 0.0, %v1109
        %v1111 = vpop.f32.mrf.mxu0
        %v1112 = vpop.f32.mrf.mxu0
        %v1113 = vadd.f32 0.0, %v1112
        %v1114 = vpop.f32.mrf.mxu0
        %1115 = vmatprep.mubr.bf16.mxu0 %v812
        %1116 = vmatmul.mubr.bf16.gmra.mxu0 %v811
        %v1117 = vpop.f32.mrf.mxu0
        %v1118 = vadd.f32 0.0, %v1117
        %v1119 = vpop.f32.mrf.mxu0
        %v1120 = vpop.f32.mrf.mxu0
        %v1121 = vadd.f32 0.0, %v1120
        %v1122 = vpop.f32.mrf.mxu0
        %1123 = vmatprep.mubr.bf16.mxu0 %v814
        %1124 = vmatmul.mubr.bf16.gmra.mxu0 %v813
        %v1125 = vpop.f32.mrf.mxu0
        %v1126 = vadd.f32 0.0, %v1125
        %v1127 = vpop.f32.mrf.mxu0
        %v1128 = vpop.f32.mrf.mxu0
        %v1129 = vadd.f32 0.0, %v1128
        %v1130 = vpop.f32.mrf.mxu0
        %1131 = vmatprep.mubr.bf16.mxu0 %v816
        %1132 = vmatmul.mubr.bf16.gmra.mxu0 %v815
        %v1133 = vpop.f32.mrf.mxu0
        %v1134 = vadd.f32 0.0, %v1133
        %v1135 = vpop.f32.mrf.mxu0
        %v1136 = vpop.f32.mrf.mxu0
        %v1137 = vadd.f32 0.0, %v1136
        %v1138 = vpop.f32.mrf.mxu0
        %1139 = vmatprep.mubr.bf16.mxu0 %v818
        %1140 = vmatmul.mubr.bf16.gmra.mxu0 %v817
        %v1141 = vpop.f32.mrf.mxu0
        %v1142 = vadd.f32 0.0, %v1141
        %v1143 = vpop.f32.mrf.mxu0
        %v1144 = vpop.f32.mrf.mxu0
        %v1145 = vadd.f32 0.0, %v1144
        %v1146 = vpop.f32.mrf.mxu0
        %1147 = vmatprep.mubr.bf16.mxu0 %v820
        %1148 = vmatmul.mubr.bf16.gmra.mxu0 %v819
        %v1149 = vpop.f32.mrf.mxu0
        %v1150 = vadd.f32 0.0, %v1149
        %v1151 = vpop.f32.mrf.mxu0
        %v1152 = vpop.f32.mrf.mxu0
        %v1153 = vadd.f32 0.0, %v1152
        %v1154 = vpop.f32.mrf.mxu0
        %1155 = vmatprep.mubr.bf16.mxu0 %v822
        %1156 = vmatmul.mubr.bf16.gmra.mxu0 %v821
        %v1157 = vpop.f32.mrf.mxu0
        %v1158 = vadd.f32 0.0, %v1157
        %v1159 = vpop.f32.mrf.mxu0
        %v1160 = vpop.f32.mrf.mxu0
        %v1161 = vadd.f32 0.0, %v1160
        %v1162 = vpop.f32.mrf.mxu0
        %1163 = vmatprep.mubr.bf16.mxu0 %v824
        %1164 = vmatmul.mubr.bf16.gmra.mxu0 %v823
        %v1165 = vpop.f32.mrf.mxu0
        %v1166 = vadd.f32 0.0, %v1165
        %v1167 = vpop.f32.mrf.mxu0
        %v1168 = vpop.f32.mrf.mxu0
        %v1169 = vadd.f32 0.0, %v1168
        %v1170 = vpop.f32.mrf.mxu0
        %1171 = vmatprep.mubr.bf16.mxu0 %v826
        %1172 = vmatmul.mubr.bf16.gmra.mxu0 %v825
        %v1173 = vpop.f32.mrf.mxu0
        %v1174 = vadd.f32 0.0, %v1173
        %v1175 = vpop.f32.mrf.mxu0
        %v1176 = vpop.f32.mrf.mxu0
        %v1177 = vadd.f32 0.0, %v1176
        %v1178 = vpop.f32.mrf.mxu0
        %1179 = vmatprep.mubr.bf16.mxu0 %v828
        %1180 = vmatmul.mubr.bf16.gmra.mxu0 %v827
        %v1181 = vpop.f32.mrf.mxu0
        %v1182 = vadd.f32 0.0, %v1181
        %v1183 = vpop.f32.mrf.mxu0
        %v1184 = vpop.f32.mrf.mxu0
        %v1185 = vadd.f32 0.0, %v1184
        %v1186 = vpop.f32.mrf.mxu0
        %1187 = vmatprep.mubr.bf16.mxu0 %v830
        %1188 = vmatmul.mubr.bf16.gmra.mxu0 %v829
        %v1189 = vpop.f32.mrf.mxu0
        %v1190 = vadd.f32 0.0, %v1189
        %v1191 = vpop.f32.mrf.mxu0
        %v1192 = vpop.f32.mrf.mxu0
        %v1193 = vadd.f32 0.0, %v1192
        %v1194 = vpop.f32.mrf.mxu0
        %1195 = vmatprep.mubr.bf16.mxu0 %v832
        %1196 = vmatmul.mubr.bf16.gmra.mxu0 %v831
        %v1197 = vpop.f32.mrf.mxu0
        %v1198 = vadd.f32 0.0, %v1197
        %v1199 = vpop.f32.mrf.mxu0
        %v1200 = vpop.f32.mrf.mxu0
        %v1201 = vadd.f32 0.0, %v1200
        %v1202 = vpop.f32.mrf.mxu0
        %1203 = vmatprep.mubr.bf16.mxu0 %v834
        %1204 = vmatmul.mubr.bf16.gmra.mxu0 %v833
        %v1205 = vpop.f32.mrf.mxu0
        %v1206 = vadd.f32 0.0, %v1205
        %v1207 = vpop.f32.mrf.mxu0
        %v1208 = vpop.f32.mrf.mxu0
        %v1209 = vadd.f32 0.0, %v1208
        %v1210 = vpop.f32.mrf.mxu0
        %1211 = vmatprep.mubr.bf16.mxu0 %v836
        %1212 = vmatmul.mubr.bf16.gmra.mxu0 %v835
        %v1213 = vpop.f32.mrf.mxu0
        %v1214 = vadd.f32 0.0, %v1213
        %v1215 = vpop.f32.mrf.mxu0
        %v1216 = vpop.f32.mrf.mxu0
        %v1217 = vadd.f32 0.0, %v1216
        %v1218 = vpop.f32.mrf.mxu0
        %1219 = vmatprep.mubr.bf16.mxu0 %v838
        %1220 = vmatmul.mubr.bf16.gmra.mxu0 %v837
        %v1221 = vpop.f32.mrf.mxu0
        %v1222 = vadd.f32 0.0, %v1221
        %v1223 = vpop.f32.mrf.mxu0
        %v1224 = vpop.f32.mrf.mxu0
        %v1225 = vadd.f32 0.0, %v1224
        %v1226 = vpop.f32.mrf.mxu0
        %1227 = vmatprep.mubr.bf16.mxu0 %v840
        %1228 = vmatmul.mubr.bf16.gmra.mxu0 %v839
        %v1229 = vpop.f32.mrf.mxu0
        %v1230 = vadd.f32 0.0, %v1229
        %v1231 = vpop.f32.mrf.mxu0
        %v1232 = vpop.f32.mrf.mxu0
        %v1233 = vadd.f32 0.0, %v1232
        %v1234 = vpop.f32.mrf.mxu0
        %1235 = vmatprep.mubr.bf16.mxu0 %v842
        %1236 = vmatmul.mubr.bf16.gmra.mxu0 %v841
        %v1237 = vpop.f32.mrf.mxu0
        %v1238 = vadd.f32 0.0, %v1237
        %v1239 = vpop.f32.mrf.mxu0
        %v1240 = vpop.f32.mrf.mxu0
        %v1241 = vadd.f32 0.0, %v1240
        %v1242 = vpop.f32.mrf.mxu0
        %1243 = vmatprep.mubr.bf16.mxu0 %v844
        %1244 = vmatmul.mubr.bf16.gmra.mxu0 %v843
        %v1245 = vpop.f32.mrf.mxu0
        %v1246 = vadd.f32 0.0, %v1245
        %v1247 = vpop.f32.mrf.mxu0
        %v1248 = vpop.f32.mrf.mxu0
        %v1249 = vadd.f32 0.0, %v1248
        %v1250 = vpop.f32.mrf.mxu0
        %1251 = vmatprep.mubr.bf16.mxu0 %v846
        %1252 = vmatmul.mubr.bf16.gmra.mxu0 %v845
        %v1253 = vpop.f32.mrf.mxu0
        %v1254 = vadd.f32 0.0, %v1253
        %v1255 = vpop.f32.mrf.mxu0
        %v1256 = vpop.f32.mrf.mxu0
        %v1257 = vadd.f32 0.0, %v1256
        %v1258 = vpop.f32.mrf.mxu0
        %1259 = vmatprep.mubr.bf16.mxu0 %v848
        %1260 = vmatmul.mubr.bf16.gmra.mxu0 %v847
        %v1261 = vpop.f32.mrf.mxu0
        %v1262 = vadd.f32 0.0, %v1261
        %v1263 = vpop.f32.mrf.mxu0
        %v1264 = vpop.f32.mrf.mxu0
        %v1265 = vadd.f32 0.0, %v1264
        %v1266 = vpop.f32.mrf.mxu0
        %1267 = vmatprep.mubr.bf16.mxu0 %v850
        %1268 = vmatmul.mubr.bf16.gmra.mxu0 %v849
        %v1269 = vpop.f32.mrf.mxu0
        %v1270 = vadd.f32 0.0, %v1269
        %v1271 = vpop.f32.mrf.mxu0
        %v1272 = vpop.f32.mrf.mxu0
        %v1273 = vadd.f32 0.0, %v1272
        %v1274 = vpop.f32.mrf.mxu0
        %1275 = vmatprep.mubr.bf16.mxu0 %v852
        %1276 = vmatmul.mubr.bf16.gmra.mxu0 %v851
        %v1277 = vpop.f32.mrf.mxu0
        %v1278 = vadd.f32 0.0, %v1277
        %v1279 = vpop.f32.mrf.mxu0
        %v1280 = vpop.f32.mrf.mxu0
        %v1281 = vadd.f32 0.0, %v1280
        %v1282 = vpop.f32.mrf.mxu0
        %1283 = vmatprep.mubr.bf16.mxu0 %v854
        %1284 = vmatmul.mubr.bf16.gmra.mxu0 %v853
        %v1285 = vpop.f32.mrf.mxu0
        %v1286 = vadd.f32 0.0, %v1285
        %v1287 = vpop.f32.mrf.mxu0
        %v1288 = vpop.f32.mrf.mxu0
        %v1289 = vadd.f32 0.0, %v1288
        %v1290 = vpop.f32.mrf.mxu0
        %1291 = vmatprep.mubr.bf16.mxu0 %v856
        %1292 = vmatmul.mubr.bf16.gmra.mxu0 %v855
        %v1293 = vpop.f32.mrf.mxu0
        %v1294 = vadd.f32 0.0, %v1293
        %v1295 = vpop.f32.mrf.mxu0
        %v1296 = vpop.f32.mrf.mxu0
        %v1297 = vadd.f32 0.0, %v1296
        %v1298 = vpop.f32.mrf.mxu0
        %1299 = vmatprep.mubr.bf16.mxu0 %v858
        %1300 = vmatmul.mubr.bf16.gmra.mxu0 %v857
        %v1301 = vpop.f32.mrf.mxu0
        %v1302 = vadd.f32 0.0, %v1301
        %v1303 = vpop.f32.mrf.mxu0
        %v1304 = vpop.f32.mrf.mxu0
        %v1305 = vadd.f32 0.0, %v1304
        %v1306 = vpop.f32.mrf.mxu0
        %1307 = vdwg.mxu0
        %v1308 = vadd.f32 %v539, %v1054
        %v1309 = vadd.f32 %v540, %v1057
        %v1310 = vadd.f32 %v541, %v1062
        %v1311 = vadd.f32 %v542, %v1065
        %v1312 = vadd.f32 %v543, %v1070
        %v1313 = vadd.f32 %v544, %v1073
        %v1314 = vadd.f32 %v545, %v1078
        %v1315 = vadd.f32 %v546, %v1081
        %v1316 = vadd.f32 %v547, %v1086
        %v1317 = vadd.f32 %v548, %v1089
        %v1318 = vadd.f32 %v549, %v1094
        %v1319 = vadd.f32 %v550, %v1097
        %v1320 = vadd.f32 %v551, %v1102
        %v1321 = vadd.f32 %v552, %v1105
        %v1322 = vadd.f32 %v553, %v1110
        %v1323 = vadd.f32 %v554, %v1113
        %v1324 = vadd.f32 %v555, %v1118
        %v1325 = vadd.f32 %v556, %v1121
        %v1326 = vadd.f32 %v557, %v1126
        %v1327 = vadd.f32 %v558, %v1129
        %v1328 = vadd.f32 %v559, %v1134
        %v1329 = vadd.f32 %v560, %v1137
        %v1330 = vadd.f32 %v561, %v1142
        %v1331 = vadd.f32 %v562, %v1145
        %v1332 = vadd.f32 %v563, %v1150
        %v1333 = vadd.f32 %v564, %v1153
        %v1334 = vadd.f32 %v565, %v1158
        %v1335 = vadd.f32 %v566, %v1161
        %v1336 = vadd.f32 %v567, %v1166
        %v1337 = vadd.f32 %v568, %v1169
        %v1338 = vadd.f32 %v569, %v1174
        %v1339 = vadd.f32 %v570, %v1177
        %v1340 = vadd.f32 %v571, %v1182
        %v1341 = vadd.f32 %v572, %v1185
        %v1342 = vadd.f32 %v573, %v1190
        %v1343 = vadd.f32 %v574, %v1193
        %v1344 = vadd.f32 %v575, %v1198
        %v1345 = vadd.f32 %v576, %v1201
        %v1346 = vadd.f32 %v577, %v1206
        %v1347 = vadd.f32 %v578, %v1209
        %v1348 = vadd.f32 %v579, %v1214
        %v1349 = vadd.f32 %v580, %v1217
        %v1350 = vadd.f32 %v581, %v1222
        %v1351 = vadd.f32 %v582, %v1225
        %v1352 = vadd.f32 %v583, %v1230
        %v1353 = vadd.f32 %v584, %v1233
        %v1354 = vadd.f32 %v585, %v1238
        %v1355 = vadd.f32 %v586, %v1241
        %v1356 = vadd.f32 %v587, %v1246
        %v1357 = vadd.f32 %v588, %v1249
        %v1358 = vadd.f32 %v589, %v1254
        %v1359 = vadd.f32 %v590, %v1257
        %v1360 = vadd.f32 %v591, %v1262
        %v1361 = vadd.f32 %v592, %v1265
        %v1362 = vadd.f32 %v593, %v1270
        %v1363 = vadd.f32 %v594, %v1273
        %v1364 = vadd.f32 %v595, %v1278
        %v1365 = vadd.f32 %v596, %v1281
        %v1366 = vadd.f32 %v597, %v1286
        %v1367 = vadd.f32 %v598, %v1289
        %v1368 = vadd.f32 %v599, %v1294
        %v1369 = vadd.f32 %v600, %v1297
        %v1370 = vadd.f32 %v601, %v1302
        %v1371 = vadd.f32 %v602, %v1305
        %1372 = vst [vmem:[#allocation10] sm:$0xff] %v1308
        %1373 = vst [vmem:[#allocation10 + $0x8] sm:$0xff] %v1309
        %1374 = vst [vmem:[#allocation10 + $0x10] sm:$0xff] %v1310
        %1375 = vst [vmem:[#allocation10 + $0x18] sm:$0xff] %v1311
        %1376 = vst [vmem:[#allocation10 + $0x20] sm:$0xff] %v1312
        %1377 = vst [vmem:[#allocation10 + $0x28] sm:$0xff] %v1313
        %1378 = vst [vmem:[#allocation10 + $0x30] sm:$0xff] %v1314
        %1379 = vst [vmem:[#allocation10 + $0x38] sm:$0xff] %v1315
        %1380 = vst [vmem:[#allocation10 + $0x40] sm:$0xff] %v1316
        %1381 = vst [vmem:[#allocation10 + $0x48] sm:$0xff] %v1317
        %1382 = vst [vmem:[#allocation10 + $0x50] sm:$0xff] %v1318
        %1383 = vst [vmem:[#allocation10 + $0x58] sm:$0xff] %v1319
        %1384 = vst [vmem:[#allocation10 + $0x60] sm:$0xff] %v1320
        %1385 = vst [vmem:[#allocation10 + $0x68] sm:$0xff] %v1321
        %1386 = vst [vmem:[#allocation10 + $0x70] sm:$0xff] %v1322
        %1387 = vst [vmem:[#allocation10 + $0x78] sm:$0xff] %v1323
        %1388 = vst [vmem:[#allocation10 + $0x80] sm:$0xff] %v1324
        %1389 = vst [vmem:[#allocation10 + $0x88] sm:$0xff] %v1325
        %1390 = vst [vmem:[#allocation10 + $0x90] sm:$0xff] %v1326
        %1391 = vst [vmem:[#allocation10 + $0x98] sm:$0xff] %v1327
        %1392 = vst [vmem:[#allocation10 + $0xa0] sm:$0xff] %v1328
        %1393 = vst [vmem:[#allocation10 + $0xa8] sm:$0xff] %v1329
        %1394 = vst [vmem:[#allocation10 + $0xb0] sm:$0xff] %v1330
        %1395 = vst [vmem:[#allocation10 + $0xb8] sm:$0xff] %v1331
        %1396 = vst [vmem:[#allocation10 + $0xc0] sm:$0xff] %v1332
        %1397 = vst [vmem:[#allocation10 + $0xc8] sm:$0xff] %v1333
        %1398 = vst [vmem:[#allocation10 + $0xd0] sm:$0xff] %v1334
        %1399 = vst [vmem:[#allocation10 + $0xd8] sm:$0xff] %v1335
        %1400 = vst [vmem:[#allocation10 + $0xe0] sm:$0xff] %v1336
        %1401 = vst [vmem:[#allocation10 + $0xe8] sm:$0xff] %v1337
        %1402 = vst [vmem:[#allocation10 + $0xf0] sm:$0xff] %v1338
        %1403 = vst [vmem:[#allocation10 + $0xf8] sm:$0xff] %v1339
        %1404 = vst [vmem:[#allocation10 + $0x100] sm:$0xff] %v1340
        %1405 = vst [vmem:[#allocation10 + $0x108] sm:$0xff] %v1341
        %1406 = vst [vmem:[#allocation10 + $0x110] sm:$0xff] %v1342
        %1407 = vst [vmem:[#allocation10 + $0x118] sm:$0xff] %v1343
        %1408 = vst [vmem:[#allocation10 + $0x120] sm:$0xff] %v1344
        %1409 = vst [vmem:[#allocation10 + $0x128] sm:$0xff] %v1345
        %1410 = vst [vmem:[#allocation10 + $0x130] sm:$0xff] %v1346
        %1411 = vst [vmem:[#allocation10 + $0x138] sm:$0xff] %v1347
        %1412 = vst [vmem:[#allocation10 + $0x140] sm:$0xff] %v1348
        %1413 = vst [vmem:[#allocation10 + $0x148] sm:$0xff] %v1349
        %1414 = vst [vmem:[#allocation10 + $0x150] sm:$0xff] %v1350
        %1415 = vst [vmem:[#allocation10 + $0x158] sm:$0xff] %v1351
        %1416 = vst [vmem:[#allocation10 + $0x160] sm:$0xff] %v1352
        %1417 = vst [vmem:[#allocation10 + $0x168] sm:$0xff] %v1353
        %1418 = vst [vmem:[#allocation10 + $0x170] sm:$0xff] %v1354
        %1419 = vst [vmem:[#allocation10 + $0x178] sm:$0xff] %v1355
        %1420 = vst [vmem:[#allocation10 + $0x180] sm:$0xff] %v1356
        %1421 = vst [vmem:[#allocation10 + $0x188] sm:$0xff] %v1357
        %1422 = vst [vmem:[#allocation10 + $0x190] sm:$0xff] %v1358
        %1423 = vst [vmem:[#allocation10 + $0x198] sm:$0xff] %v1359
        %1424 = vst [vmem:[#allocation10 + $0x1a0] sm:$0xff] %v1360
        %1425 = vst [vmem:[#allocation10 + $0x1a8] sm:$0xff] %v1361
        %1426 = vst [vmem:[#allocation10 + $0x1b0] sm:$0xff] %v1362
        %1427 = vst [vmem:[#allocation10 + $0x1b8] sm:$0xff] %v1363
        %1428 = vst [vmem:[#allocation10 + $0x1c0] sm:$0xff] %v1364
        %1429 = vst [vmem:[#allocation10 + $0x1c8] sm:$0xff] %v1365
        %1430 = vst [vmem:[#allocation10 + $0x1d0] sm:$0xff] %v1366
        %1431 = vst [vmem:[#allocation10 + $0x1d8] sm:$0xff] %v1367
        %1432 = vst [vmem:[#allocation10 + $0x1e0] sm:$0xff] %v1368
        %1433 = vst [vmem:[#allocation10 + $0x1e8] sm:$0xff] %v1369
        %1434 = vst [vmem:[#allocation10 + $0x1f0] sm:$0xff] %v1370
        %1435 = vst [vmem:[#allocation10 + $0x1f8] sm:$0xff] %v1371
        %v1436 = vld [vmem:[#allocation9] sm:$0xf]
        %v1437 = vld [vmem:[#allocation9 + $0x4] sm:$0xf]
        %v1438 = vld [vmem:[#allocation9 + $0x8] sm:$0xf]
        %v1439 = vld [vmem:[#allocation9 + $0xc] sm:$0xf]
        %v1440 = vld [vmem:[#allocation9 + $0x10] sm:$0xf]
        %v1441 = vld [vmem:[#allocation9 + $0x14] sm:$0xf]
        %v1442 = vld [vmem:[#allocation9 + $0x18] sm:$0xf]
        %v1443 = vld [vmem:[#allocation9 + $0x1c] sm:$0xf]
        %v1444 = vld [vmem:[#allocation9 + $0x20] sm:$0xf]
        %v1445 = vld [vmem:[#allocation9 + $0x24] sm:$0xf]
        %v1446 = vld [vmem:[#allocation9 + $0x28] sm:$0xf]
        %v1447 = vld [vmem:[#allocation9 + $0x2c] sm:$0xf]
        %v1448 = vld [vmem:[#allocation9 + $0x30] sm:$0xf]
        %v1449 = vld [vmem:[#allocation9 + $0x34] sm:$0xf]
        %v1450 = vld [vmem:[#allocation9 + $0x38] sm:$0xf]
        %v1451 = vld [vmem:[#allocation9 + $0x3c] sm:$0xf]
        %v1452 = vld [vmem:[#allocation9 + $0x40] sm:$0xf]
        %v1453 = vld [vmem:[#allocation9 + $0x44] sm:$0xf]
        %v1454 = vld [vmem:[#allocation9 + $0x48] sm:$0xf]
        %v1455 = vld [vmem:[#allocation9 + $0x4c] sm:$0xf]
        %v1456 = vld [vmem:[#allocation9 + $0x50] sm:$0xf]
        %v1457 = vld [vmem:[#allocation9 + $0x54] sm:$0xf]
        %v1458 = vld [vmem:[#allocation9 + $0x58] sm:$0xf]
        %v1459 = vld [vmem:[#allocation9 + $0x5c] sm:$0xf]
        %v1460 = vld [vmem:[#allocation9 + $0x60] sm:$0xf]
        %v1461 = vld [vmem:[#allocation9 + $0x64] sm:$0xf]
        %v1462 = vld [vmem:[#allocation9 + $0x68] sm:$0xf]
        %v1463 = vld [vmem:[#allocation9 + $0x6c] sm:$0xf]
        %v1464 = vld [vmem:[#allocation9 + $0x70] sm:$0xf]
        %v1465 = vld [vmem:[#allocation9 + $0x74] sm:$0xf]
        %v1466 = vld [vmem:[#allocation9 + $0x78] sm:$0xf]
        %v1467 = vld [vmem:[#allocation9 + $0x7c] sm:$0xf]
        %v1468 = vld [vmem:[#allocation9 + $0x80] sm:$0xf]
        %v1469 = vld [vmem:[#allocation9 + $0x84] sm:$0xf]
        %v1470 = vld [vmem:[#allocation9 + $0x88] sm:$0xf]
        %v1471 = vld [vmem:[#allocation9 + $0x8c] sm:$0xf]
        %v1472 = vld [vmem:[#allocation9 + $0x90] sm:$0xf]
        %v1473 = vld [vmem:[#allocation9 + $0x94] sm:$0xf]
        %v1474 = vld [vmem:[#allocation9 + $0x98] sm:$0xf]
        %v1475 = vld [vmem:[#allocation9 + $0x9c] sm:$0xf]
        %v1476 = vld [vmem:[#allocation9 + $0xa0] sm:$0xf]
        %v1477 = vld [vmem:[#allocation9 + $0xa4] sm:$0xf]
        %v1478 = vld [vmem:[#allocation9 + $0xa8] sm:$0xf]
        %v1479 = vld [vmem:[#allocation9 + $0xac] sm:$0xf]
        %v1480 = vld [vmem:[#allocation9 + $0xb0] sm:$0xf]
        %v1481 = vld [vmem:[#allocation9 + $0xb4] sm:$0xf]
        %v1482 = vld [vmem:[#allocation9 + $0xb8] sm:$0xf]
        %v1483 = vld [vmem:[#allocation9 + $0xbc] sm:$0xf]
        %v1484 = vld [vmem:[#allocation9 + $0xc0] sm:$0xf]
        %v1485 = vld [vmem:[#allocation9 + $0xc4] sm:$0xf]
        %v1486 = vld [vmem:[#allocation9 + $0xc8] sm:$0xf]
        %v1487 = vld [vmem:[#allocation9 + $0xcc] sm:$0xf]
        %v1488 = vld [vmem:[#allocation9 + $0xd0] sm:$0xf]
        %v1489 = vld [vmem:[#allocation9 + $0xd4] sm:$0xf]
        %v1490 = vld [vmem:[#allocation9 + $0xd8] sm:$0xf]
        %v1491 = vld [vmem:[#allocation9 + $0xdc] sm:$0xf]
        %v1492 = vld [vmem:[#allocation9 + $0xe0] sm:$0xf]
        %v1493 = vld [vmem:[#allocation9 + $0xe4] sm:$0xf]
        %v1494 = vld [vmem:[#allocation9 + $0xe8] sm:$0xf]
        %v1495 = vld [vmem:[#allocation9 + $0xec] sm:$0xf]
        %v1496 = vld [vmem:[#allocation9 + $0xf0] sm:$0xf]
        %v1497 = vld [vmem:[#allocation9 + $0xf4] sm:$0xf]
        %v1498 = vld [vmem:[#allocation9 + $0xf8] sm:$0xf]
        %v1499 = vld [vmem:[#allocation9 + $0xfc] sm:$0xf]
        %1500 = vxpose.xlu0.c.b16.start [1/8] %v795, 128
        %1501 = vxpose.xlu0.c.b16.cont [2/8] %v797, 128
        %1502 = vxpose.xlu0.c.b16.cont [3/8] %v799, 128
        %1503 = vxpose.xlu0.c.b16.cont [4/8] %v801, 128
        %1504 = vxpose.xlu0.c.b16.cont [5/8] %v803, 128
        %1505 = vxpose.xlu0.c.b16.cont [6/8] %v805, 128
        %1506 = vxpose.xlu0.c.b16.cont [7/8] %v807, 128
        %1507 = vxpose.xlu0.c.b16.end [8/8] %v809, 128
        %v1508 = vpop.trf.xlu0
        %v1509 = vpop.trf.xlu0
        %v1510 = vpop.trf.xlu0
        %v1511 = vpop.trf.xlu0
        %v1512 = vpop.trf.xlu0
        %v1513 = vpop.trf.xlu0
        %v1514 = vpop.trf.xlu0
        %v1515 = vpop.trf.xlu0
        %1516 = vxpose.xlu0.c.b16.start [1/8] %v796, 128
        %1517 = vxpose.xlu0.c.b16.cont [2/8] %v798, 128
        %1518 = vxpose.xlu0.c.b16.cont [3/8] %v800, 128
        %1519 = vxpose.xlu0.c.b16.cont [4/8] %v802, 128
        %1520 = vxpose.xlu0.c.b16.cont [5/8] %v804, 128
        %1521 = vxpose.xlu0.c.b16.cont [6/8] %v806, 128
        %1522 = vxpose.xlu0.c.b16.cont [7/8] %v808, 128
        %1523 = vxpose.xlu0.c.b16.end [8/8] %v810, 128
        %v1524 = vpop.trf.xlu0
        %v1525 = vpop.trf.xlu0
        %v1526 = vpop.trf.xlu0
        %v1527 = vpop.trf.xlu0
        %v1528 = vpop.trf.xlu0
        %v1529 = vpop.trf.xlu0
        %v1530 = vpop.trf.xlu0
        %v1531 = vpop.trf.xlu0
        %1532 = vxpose.xlu0.c.b16.start [1/8] %v811, 128
        %1533 = vxpose.xlu0.c.b16.cont [2/8] %v813, 128
        %1534 = vxpose.xlu0.c.b16.cont [3/8] %v815, 128
        %1535 = vxpose.xlu0.c.b16.cont [4/8] %v817, 128
        %1536 = vxpose.xlu0.c.b16.cont [5/8] %v819, 128
        %1537 = vxpose.xlu0.c.b16.cont [6/8] %v821, 128
        %1538 = vxpose.xlu0.c.b16.cont [7/8] %v823, 128
        %1539 = vxpose.xlu0.c.b16.end [8/8] %v825, 128
        %v1540 = vpop.trf.xlu0
        %v1541 = vpop.trf.xlu0
        %v1542 = vpop.trf.xlu0
        %v1543 = vpop.trf.xlu0
        %v1544 = vpop.trf.xlu0
        %v1545 = vpop.trf.xlu0
        %v1546 = vpop.trf.xlu0
        %v1547 = vpop.trf.xlu0
        %1548 = vxpose.xlu0.c.b16.start [1/8] %v812, 128
        %1549 = vxpose.xlu0.c.b16.cont [2/8] %v814, 128
        %1550 = vxpose.xlu0.c.b16.cont [3/8] %v816, 128
        %1551 = vxpose.xlu0.c.b16.cont [4/8] %v818, 128
        %1552 = vxpose.xlu0.c.b16.cont [5/8] %v820, 128
        %1553 = vxpose.xlu0.c.b16.cont [6/8] %v822, 128
        %1554 = vxpose.xlu0.c.b16.cont [7/8] %v824, 128
        %1555 = vxpose.xlu0.c.b16.end [8/8] %v826, 128
        %v1556 = vpop.trf.xlu0
        %v1557 = vpop.trf.xlu0
        %v1558 = vpop.trf.xlu0
        %v1559 = vpop.trf.xlu0
        %v1560 = vpop.trf.xlu0
        %v1561 = vpop.trf.xlu0
        %v1562 = vpop.trf.xlu0
        %v1563 = vpop.trf.xlu0
        %1564 = vxpose.xlu0.c.b16.start [1/8] %v827, 128
        %1565 = vxpose.xlu0.c.b16.cont [2/8] %v829, 128
        %1566 = vxpose.xlu0.c.b16.cont [3/8] %v831, 128
        %1567 = vxpose.xlu0.c.b16.cont [4/8] %v833, 128
        %1568 = vxpose.xlu0.c.b16.cont [5/8] %v835, 128
        %1569 = vxpose.xlu0.c.b16.cont [6/8] %v837, 128
        %1570 = vxpose.xlu0.c.b16.cont [7/8] %v839, 128
        %1571 = vxpose.xlu0.c.b16.end [8/8] %v841, 128
        %v1572 = vpop.trf.xlu0
        %v1573 = vpop.trf.xlu0
        %v1574 = vpop.trf.xlu0
        %v1575 = vpop.trf.xlu0
        %v1576 = vpop.trf.xlu0
        %v1577 = vpop.trf.xlu0
        %v1578 = vpop.trf.xlu0
        %v1579 = vpop.trf.xlu0
        %1580 = vxpose.xlu0.c.b16.start [1/8] %v828, 128
        %1581 = vxpose.xlu0.c.b16.cont [2/8] %v830, 128
        %1582 = vxpose.xlu0.c.b16.cont [3/8] %v832, 128
        %1583 = vxpose.xlu0.c.b16.cont [4/8] %v834, 128
        %1584 = vxpose.xlu0.c.b16.cont [5/8] %v836, 128
        %1585 = vxpose.xlu0.c.b16.cont [6/8] %v838, 128
        %1586 = vxpose.xlu0.c.b16.cont [7/8] %v840, 128
        %1587 = vxpose.xlu0.c.b16.end [8/8] %v842, 128
        %v1588 = vpop.trf.xlu0
        %v1589 = vpop.trf.xlu0
        %v1590 = vpop.trf.xlu0
        %v1591 = vpop.trf.xlu0
        %v1592 = vpop.trf.xlu0
        %v1593 = vpop.trf.xlu0
        %v1594 = vpop.trf.xlu0
        %v1595 = vpop.trf.xlu0
        %1596 = vxpose.xlu0.c.b16.start [1/8] %v843, 128
        %1597 = vxpose.xlu0.c.b16.cont [2/8] %v845, 128
        %1598 = vxpose.xlu0.c.b16.cont [3/8] %v847, 128
        %1599 = vxpose.xlu0.c.b16.cont [4/8] %v849, 128
        %1600 = vxpose.xlu0.c.b16.cont [5/8] %v851, 128
        %1601 = vxpose.xlu0.c.b16.cont [6/8] %v853, 128
        %1602 = vxpose.xlu0.c.b16.cont [7/8] %v855, 128
        %1603 = vxpose.xlu0.c.b16.end [8/8] %v857, 128
        %v1604 = vpop.trf.xlu0
        %v1605 = vpop.trf.xlu0
        %v1606 = vpop.trf.xlu0
        %v1607 = vpop.trf.xlu0
        %v1608 = vpop.trf.xlu0
        %v1609 = vpop.trf.xlu0
        %v1610 = vpop.trf.xlu0
        %v1611 = vpop.trf.xlu0
        %1612 = vxpose.xlu0.c.b16.start [1/8] %v844, 128
        %1613 = vxpose.xlu0.c.b16.cont [2/8] %v846, 128
        %1614 = vxpose.xlu0.c.b16.cont [3/8] %v848, 128
        %1615 = vxpose.xlu0.c.b16.cont [4/8] %v850, 128
        %1616 = vxpose.xlu0.c.b16.cont [5/8] %v852, 128
        %1617 = vxpose.xlu0.c.b16.cont [6/8] %v854, 128
        %1618 = vxpose.xlu0.c.b16.cont [7/8] %v856, 128
        %1619 = vxpose.xlu0.c.b16.end [8/8] %v858, 128
        %v1620 = vpop.trf.xlu0
        %v1621 = vpop.trf.xlu0
        %v1622 = vpop.trf.xlu0
        %v1623 = vpop.trf.xlu0
        %v1624 = vpop.trf.xlu0
        %v1625 = vpop.trf.xlu0
        %v1626 = vpop.trf.xlu0
        %v1627 = vpop.trf.xlu0
        %v1692 = vunpack.c.l.b16 %v1436
        %v1693 = vunpack.c.l.b16 %v1437
        %v1694 = vunpack.c.l.b16 %v1438
        %v1695 = vunpack.c.l.b16 %v1439
        %v1696 = vunpack.c.l.b16 %v1440
        %v1697 = vunpack.c.l.b16 %v1441
        %v1698 = vunpack.c.l.b16 %v1442
        %v1699 = vunpack.c.l.b16 %v1443
        %v1700 = vunpack.c.l.b16 %v1444
        %v1701 = vunpack.c.l.b16 %v1445
        %v1702 = vunpack.c.l.b16 %v1446
        %v1703 = vunpack.c.l.b16 %v1447
        %v1704 = vunpack.c.l.b16 %v1448
        %v1705 = vunpack.c.l.b16 %v1449
        %v1706 = vunpack.c.l.b16 %v1450
        %v1707 = vunpack.c.l.b16 %v1451
        %v1708 = vunpack.c.l.b16 %v1452
        %v1709 = vunpack.c.l.b16 %v1453
        %v1710 = vunpack.c.l.b16 %v1454
        %v1711 = vunpack.c.l.b16 %v1455
        %v1712 = vunpack.c.l.b16 %v1456
        %v1713 = vunpack.c.l.b16 %v1457
        %v1714 = vunpack.c.l.b16 %v1458
        %v1715 = vunpack.c.l.b16 %v1459
        %v1716 = vunpack.c.l.b16 %v1460
        %v1717 = vunpack.c.l.b16 %v1461
        %v1718 = vunpack.c.l.b16 %v1462
        %v1719 = vunpack.c.l.b16 %v1463
        %v1720 = vunpack.c.l.b16 %v1464
        %v1721 = vunpack.c.l.b16 %v1465
        %v1722 = vunpack.c.l.b16 %v1466
        %v1723 = vunpack.c.l.b16 %v1467
        %v1724 = vunpack.c.l.b16 %v1468
        %v1725 = vunpack.c.l.b16 %v1469
        %v1726 = vunpack.c.l.b16 %v1470
        %v1727 = vunpack.c.l.b16 %v1471
        %v1728 = vunpack.c.l.b16 %v1472
        %v1729 = vunpack.c.l.b16 %v1473
        %v1730 = vunpack.c.l.b16 %v1474
        %v1731 = vunpack.c.l.b16 %v1475
        %v1732 = vunpack.c.l.b16 %v1476
        %v1733 = vunpack.c.l.b16 %v1477
        %v1734 = vunpack.c.l.b16 %v1478
        %v1735 = vunpack.c.l.b16 %v1479
        %v1736 = vunpack.c.l.b16 %v1480
        %v1737 = vunpack.c.l.b16 %v1481
        %v1738 = vunpack.c.l.b16 %v1482
        %v1739 = vunpack.c.l.b16 %v1483
        %v1740 = vunpack.c.l.b16 %v1484
        %v1741 = vunpack.c.l.b16 %v1485
        %v1742 = vunpack.c.l.b16 %v1486
        %v1743 = vunpack.c.l.b16 %v1487
        %v1744 = vunpack.c.l.b16 %v1488
        %v1745 = vunpack.c.l.b16 %v1489
        %v1746 = vunpack.c.l.b16 %v1490
        %v1747 = vunpack.c.l.b16 %v1491
        %v1748 = vunpack.c.l.b16 %v1492
        %v1749 = vunpack.c.l.b16 %v1493
        %v1750 = vunpack.c.l.b16 %v1494
        %v1751 = vunpack.c.l.b16 %v1495
        %v1752 = vunpack.c.l.b16 %v1496
        %v1753 = vunpack.c.l.b16 %v1497
        %v1754 = vunpack.c.l.b16 %v1498
        %v1755 = vunpack.c.l.b16 %v1499
        %v1756 = vpack.c.b16 %v1693, %v1692
        %v1757 = vpack.c.b16 %v1695, %v1694
        %v1758 = vpack.c.b16 %v1697, %v1696
        %v1759 = vpack.c.b16 %v1699, %v1698
        %v1760 = vpack.c.b16 %v1701, %v1700
        %v1761 = vpack.c.b16 %v1703, %v1702
        %v1762 = vpack.c.b16 %v1705, %v1704
        %v1763 = vpack.c.b16 %v1707, %v1706
        %v1764 = vpack.c.b16 %v1709, %v1708
        %v1765 = vpack.c.b16 %v1711, %v1710
        %v1766 = vpack.c.b16 %v1713, %v1712
        %v1767 = vpack.c.b16 %v1715, %v1714
        %v1768 = vpack.c.b16 %v1717, %v1716
        %v1769 = vpack.c.b16 %v1719, %v1718
        %v1770 = vpack.c.b16 %v1721, %v1720
        %v1771 = vpack.c.b16 %v1723, %v1722
        %v1772 = vpack.c.b16 %v1725, %v1724
        %v1773 = vpack.c.b16 %v1727, %v1726
        %v1774 = vpack.c.b16 %v1729, %v1728
        %v1775 = vpack.c.b16 %v1731, %v1730
        %v1776 = vpack.c.b16 %v1733, %v1732
        %v1777 = vpack.c.b16 %v1735, %v1734
        %v1778 = vpack.c.b16 %v1737, %v1736
        %v1779 = vpack.c.b16 %v1739, %v1738
        %v1780 = vpack.c.b16 %v1741, %v1740
        %v1781 = vpack.c.b16 %v1743, %v1742
        %v1782 = vpack.c.b16 %v1745, %v1744
        %v1783 = vpack.c.b16 %v1747, %v1746
        %v1784 = vpack.c.b16 %v1749, %v1748
        %v1785 = vpack.c.b16 %v1751, %v1750
        %v1786 = vpack.c.b16 %v1753, %v1752
        %v1787 = vpack.c.b16 %v1755, %v1754
        %1820 = vmatprep.subr.bf16.mxu0 0
        %1821 = vmatpush1.bf16.msra.mxu0 %v1763
        %1822 = vmatprep.subr.bf16.mxu0 0
        %1823 = vmatpush1.bf16.msra.mxu0 %v1762
        %1824 = vmatprep.subr.bf16.mxu0 0
        %1825 = vmatpush1.bf16.msra.mxu0 %v1761
        %1826 = vmatprep.subr.bf16.mxu0 0
        %1827 = vmatpush1.bf16.msra.mxu0 %v1760
        %1828 = vmatprep.subr.bf16.mxu0 0
        %1829 = vmatpush1.bf16.msra.mxu0 %v1759
        %1830 = vmatprep.subr.bf16.mxu0 0
        %1831 = vmatpush1.bf16.msra.mxu0 %v1758
        %1832 = vmatprep.subr.bf16.mxu0 0
        %1833 = vmatpush1.bf16.msra.mxu0 %v1757
        %1834 = vmatprep.subr.bf16.mxu0 0
        %1835 = vmatpush1.bf16.msra.mxu0 %v1756
        %1836 = vmatprep.subr.bf16.mxu0 0
        %1837 = vmatpush2.bf16.msra.mxu0 %v1771
        %1838 = vmatprep.subr.bf16.mxu0 0
        %1839 = vmatpush2.bf16.msra.mxu0 %v1770
        %1840 = vmatprep.subr.bf16.mxu0 0
        %1841 = vmatpush2.bf16.msra.mxu0 %v1769
        %1842 = vmatprep.subr.bf16.mxu0 0
        %1843 = vmatpush2.bf16.msra.mxu0 %v1768
        %1844 = vmatprep.subr.bf16.mxu0 0
        %1845 = vmatpush2.bf16.msra.mxu0 %v1767
        %1846 = vmatprep.subr.bf16.mxu0 0
        %1847 = vmatpush2.bf16.msra.mxu0 %v1766
        %1848 = vmatprep.subr.bf16.mxu0 0
        %1849 = vmatpush2.bf16.msra.mxu0 %v1765
        %1850 = vmatprep.subr.bf16.mxu0 0
        %1851 = vmatpush2.bf16.msra.mxu0 %v1764
        %1852 = vmatprep.mubr.bf16.mxu0 %v1540
        %1853 = vmatmul.mubr.bf16.gmra.mxu0 %v1508
        %v1854 = vpop.f32.mrf.mxu0
        %v1855 = vadd.f32 0.0, %v1854
        %v1856 = vpop.f32.mrf.mxu0
        %v1857 = vpop.f32.mrf.mxu0
        %v1858 = vadd.f32 0.0, %v1857
        %v1859 = vpop.f32.mrf.mxu0
        %1860 = vmatprep.mubr.bf16.mxu0 %v1541
        %1861 = vmatmul.mubr.bf16.gmra.mxu0 %v1509
        %v1862 = vpop.f32.mrf.mxu0
        %v1863 = vadd.f32 0.0, %v1862
        %v1864 = vpop.f32.mrf.mxu0
        %v1865 = vpop.f32.mrf.mxu0
        %v1866 = vadd.f32 0.0, %v1865
        %v1867 = vpop.f32.mrf.mxu0
        %1868 = vmatprep.mubr.bf16.mxu0 %v1542
        %1869 = vmatmul.mubr.bf16.gmra.mxu0 %v1510
        %v1870 = vpop.f32.mrf.mxu0
        %v1871 = vadd.f32 0.0, %v1870
        %v1872 = vpop.f32.mrf.mxu0
        %v1873 = vpop.f32.mrf.mxu0
        %v1874 = vadd.f32 0.0, %v1873
        %v1875 = vpop.f32.mrf.mxu0
        %1876 = vmatprep.mubr.bf16.mxu0 %v1543
        %1877 = vmatmul.mubr.bf16.gmra.mxu0 %v1511
        %v1878 = vpop.f32.mrf.mxu0
        %v1879 = vadd.f32 0.0, %v1878
        %v1880 = vpop.f32.mrf.mxu0
        %v1881 = vpop.f32.mrf.mxu0
        %v1882 = vadd.f32 0.0, %v1881
        %v1883 = vpop.f32.mrf.mxu0
        %1884 = vmatprep.mubr.bf16.mxu0 %v1544
        %1885 = vmatmul.mubr.bf16.gmra.mxu0 %v1512
        %v1886 = vpop.f32.mrf.mxu0
        %v1887 = vadd.f32 0.0, %v1886
        %v1888 = vpop.f32.mrf.mxu0
        %v1889 = vpop.f32.mrf.mxu0
        %v1890 = vadd.f32 0.0, %v1889
        %v1891 = vpop.f32.mrf.mxu0
        %1892 = vmatprep.mubr.bf16.mxu0 %v1545
        %1893 = vmatmul.mubr.bf16.gmra.mxu0 %v1513
        %v1894 = vpop.f32.mrf.mxu0
        %v1895 = vadd.f32 0.0, %v1894
        %v1896 = vpop.f32.mrf.mxu0
        %v1897 = vpop.f32.mrf.mxu0
        %v1898 = vadd.f32 0.0, %v1897
        %v1899 = vpop.f32.mrf.mxu0
        %1900 = vmatprep.mubr.bf16.mxu0 %v1546
        %1901 = vmatmul.mubr.bf16.gmra.mxu0 %v1514
        %v1902 = vpop.f32.mrf.mxu0
        %v1903 = vadd.f32 0.0, %v1902
        %v1904 = vpop.f32.mrf.mxu0
        %v1905 = vpop.f32.mrf.mxu0
        %v1906 = vadd.f32 0.0, %v1905
        %v1907 = vpop.f32.mrf.mxu0
        %1908 = vmatprep.mubr.bf16.mxu0 %v1547
        %1909 = vmatmul.mubr.bf16.gmra.mxu0 %v1515
        %v1910 = vpop.f32.mrf.mxu0
        %v1911 = vadd.f32 0.0, %v1910
        %v1912 = vpop.f32.mrf.mxu0
        %v1913 = vpop.f32.mrf.mxu0
        %v1914 = vadd.f32 0.0, %v1913
        %v1915 = vpop.f32.mrf.mxu0
        %1916 = vmatprep.mubr.bf16.mxu0 %v1556
        %1917 = vmatmul.mubr.bf16.gmra.mxu0 %v1524
        %v1918 = vpop.f32.mrf.mxu0
        %v1919 = vadd.f32 0.0, %v1918
        %v1920 = vpop.f32.mrf.mxu0
        %v1921 = vpop.f32.mrf.mxu0
        %v1922 = vadd.f32 0.0, %v1921
        %v1923 = vpop.f32.mrf.mxu0
        %1924 = vmatprep.mubr.bf16.mxu0 %v1557
        %1925 = vmatmul.mubr.bf16.gmra.mxu0 %v1525
        %v1926 = vpop.f32.mrf.mxu0
        %v1927 = vadd.f32 0.0, %v1926
        %v1928 = vpop.f32.mrf.mxu0
        %v1929 = vpop.f32.mrf.mxu0
        %v1930 = vadd.f32 0.0, %v1929
        %v1931 = vpop.f32.mrf.mxu0
        %1932 = vmatprep.mubr.bf16.mxu0 %v1558
        %1933 = vmatmul.mubr.bf16.gmra.mxu0 %v1526
        %v1934 = vpop.f32.mrf.mxu0
        %v1935 = vadd.f32 0.0, %v1934
        %v1936 = vpop.f32.mrf.mxu0
        %v1937 = vpop.f32.mrf.mxu0
        %v1938 = vadd.f32 0.0, %v1937
        %v1939 = vpop.f32.mrf.mxu0
        %1940 = vmatprep.mubr.bf16.mxu0 %v1559
        %1941 = vmatmul.mubr.bf16.gmra.mxu0 %v1527
        %v1942 = vpop.f32.mrf.mxu0
        %v1943 = vadd.f32 0.0, %v1942
        %v1944 = vpop.f32.mrf.mxu0
        %v1945 = vpop.f32.mrf.mxu0
        %v1946 = vadd.f32 0.0, %v1945
        %v1947 = vpop.f32.mrf.mxu0
        %1948 = vmatprep.mubr.bf16.mxu0 %v1560
        %1949 = vmatmul.mubr.bf16.gmra.mxu0 %v1528
        %v1950 = vpop.f32.mrf.mxu0
        %v1951 = vadd.f32 0.0, %v1950
        %v1952 = vpop.f32.mrf.mxu0
        %v1953 = vpop.f32.mrf.mxu0
        %v1954 = vadd.f32 0.0, %v1953
        %v1955 = vpop.f32.mrf.mxu0
        %1956 = vmatprep.mubr.bf16.mxu0 %v1561
        %1957 = vmatmul.mubr.bf16.gmra.mxu0 %v1529
        %v1958 = vpop.f32.mrf.mxu0
        %v1959 = vadd.f32 0.0, %v1958
        %v1960 = vpop.f32.mrf.mxu0
        %v1961 = vpop.f32.mrf.mxu0
        %v1962 = vadd.f32 0.0, %v1961
        %v1963 = vpop.f32.mrf.mxu0
        %1964 = vmatprep.mubr.bf16.mxu0 %v1562
        %1965 = vmatmul.mubr.bf16.gmra.mxu0 %v1530
        %v1966 = vpop.f32.mrf.mxu0
        %v1967 = vadd.f32 0.0, %v1966
        %v1968 = vpop.f32.mrf.mxu0
        %v1969 = vpop.f32.mrf.mxu0
        %v1970 = vadd.f32 0.0, %v1969
        %v1971 = vpop.f32.mrf.mxu0
        %1972 = vmatprep.mubr.bf16.mxu0 %v1563
        %1973 = vmatmul.mubr.bf16.gmra.mxu0 %v1531
        %v1974 = vpop.f32.mrf.mxu0
        %v1975 = vadd.f32 0.0, %v1974
        %v1976 = vpop.f32.mrf.mxu0
        %v1977 = vpop.f32.mrf.mxu0
        %v1978 = vadd.f32 0.0, %v1977
        %v1979 = vpop.f32.mrf.mxu0
        %1980 = vdwg.mxu0
        %1981 = vmatprep.subr.bf16.mxu0 0
        %1982 = vmatpush1.bf16.msra.mxu0 %v1779
        %1983 = vmatprep.subr.bf16.mxu0 0
        %1984 = vmatpush1.bf16.msra.mxu0 %v1778
        %1985 = vmatprep.subr.bf16.mxu0 0
        %1986 = vmatpush1.bf16.msra.mxu0 %v1777
        %1987 = vmatprep.subr.bf16.mxu0 0
        %1988 = vmatpush1.bf16.msra.mxu0 %v1776
        %1989 = vmatprep.subr.bf16.mxu0 0
        %1990 = vmatpush1.bf16.msra.mxu0 %v1775
        %1991 = vmatprep.subr.bf16.mxu0 0
        %1992 = vmatpush1.bf16.msra.mxu0 %v1774
        %1993 = vmatprep.subr.bf16.mxu0 0
        %1994 = vmatpush1.bf16.msra.mxu0 %v1773
        %1995 = vmatprep.subr.bf16.mxu0 0
        %1996 = vmatpush1.bf16.msra.mxu0 %v1772
        %1997 = vmatprep.subr.bf16.mxu0 0
        %1998 = vmatpush2.bf16.msra.mxu0 %v1787
        %1999 = vmatprep.subr.bf16.mxu0 0
        %2000 = vmatpush2.bf16.msra.mxu0 %v1786
        %2001 = vmatprep.subr.bf16.mxu0 0
        %2002 = vmatpush2.bf16.msra.mxu0 %v1785
        %2003 = vmatprep.subr.bf16.mxu0 0
        %2004 = vmatpush2.bf16.msra.mxu0 %v1784
        %2005 = vmatprep.subr.bf16.mxu0 0
        %2006 = vmatpush2.bf16.msra.mxu0 %v1783
        %2007 = vmatprep.subr.bf16.mxu0 0
        %2008 = vmatpush2.bf16.msra.mxu0 %v1782
        %2009 = vmatprep.subr.bf16.mxu0 0
        %2010 = vmatpush2.bf16.msra.mxu0 %v1781
        %2011 = vmatprep.subr.bf16.mxu0 0
        %2012 = vmatpush2.bf16.msra.mxu0 %v1780
        %2013 = vmatprep.mubr.bf16.mxu0 %v1604
        %2014 = vmatmul.mubr.bf16.gmra.mxu0 %v1572
        %v2015 = vpop.f32.mrf.mxu0
        %v2016 = vadd.f32 %v1855, %v2015
        %v2017 = vpop.f32.mrf.mxu0
        %v2018 = vpop.f32.mrf.mxu0
        %v2019 = vadd.f32 %v1858, %v2018
        %v2020 = vpop.f32.mrf.mxu0
        %2021 = vmatprep.mubr.bf16.mxu0 %v1605
        %2022 = vmatmul.mubr.bf16.gmra.mxu0 %v1573
        %v2023 = vpop.f32.mrf.mxu0
        %v2024 = vadd.f32 %v1863, %v2023
        %v2025 = vpop.f32.mrf.mxu0
        %v2026 = vpop.f32.mrf.mxu0
        %v2027 = vadd.f32 %v1866, %v2026
        %v2028 = vpop.f32.mrf.mxu0
        %2029 = vmatprep.mubr.bf16.mxu0 %v1606
        %2030 = vmatmul.mubr.bf16.gmra.mxu0 %v1574
        %v2031 = vpop.f32.mrf.mxu0
        %v2032 = vadd.f32 %v1871, %v2031
        %v2033 = vpop.f32.mrf.mxu0
        %v2034 = vpop.f32.mrf.mxu0
        %v2035 = vadd.f32 %v1874, %v2034
        %v2036 = vpop.f32.mrf.mxu0
        %2037 = vmatprep.mubr.bf16.mxu0 %v1607
        %2038 = vmatmul.mubr.bf16.gmra.mxu0 %v1575
        %v2039 = vpop.f32.mrf.mxu0
        %v2040 = vadd.f32 %v1879, %v2039
        %v2041 = vpop.f32.mrf.mxu0
        %v2042 = vpop.f32.mrf.mxu0
        %v2043 = vadd.f32 %v1882, %v2042
        %v2044 = vpop.f32.mrf.mxu0
        %2045 = vmatprep.mubr.bf16.mxu0 %v1608
        %2046 = vmatmul.mubr.bf16.gmra.mxu0 %v1576
        %v2047 = vpop.f32.mrf.mxu0
        %v2048 = vadd.f32 %v1887, %v2047
        %v2049 = vpop.f32.mrf.mxu0
        %v2050 = vpop.f32.mrf.mxu0
        %v2051 = vadd.f32 %v1890, %v2050
        %v2052 = vpop.f32.mrf.mxu0
        %2053 = vmatprep.mubr.bf16.mxu0 %v1609
        %2054 = vmatmul.mubr.bf16.gmra.mxu0 %v1577
        %v2055 = vpop.f32.mrf.mxu0
        %v2056 = vadd.f32 %v1895, %v2055
        %v2057 = vpop.f32.mrf.mxu0
        %v2058 = vpop.f32.mrf.mxu0
        %v2059 = vadd.f32 %v1898, %v2058
        %v2060 = vpop.f32.mrf.mxu0
        %2061 = vmatprep.mubr.bf16.mxu0 %v1610
        %2062 = vmatmul.mubr.bf16.gmra.mxu0 %v1578
        %v2063 = vpop.f32.mrf.mxu0
        %v2064 = vadd.f32 %v1903, %v2063
        %v2065 = vpop.f32.mrf.mxu0
        %v2066 = vpop.f32.mrf.mxu0
        %v2067 = vadd.f32 %v1906, %v2066
        %v2068 = vpop.f32.mrf.mxu0
        %2069 = vmatprep.mubr.bf16.mxu0 %v1611
        %2070 = vmatmul.mubr.bf16.gmra.mxu0 %v1579
        %v2071 = vpop.f32.mrf.mxu0
        %v2072 = vadd.f32 %v1911, %v2071
        %v2073 = vpop.f32.mrf.mxu0
        %v2074 = vpop.f32.mrf.mxu0
        %v2075 = vadd.f32 %v1914, %v2074
        %v2076 = vpop.f32.mrf.mxu0
        %2077 = vmatprep.mubr.bf16.mxu0 %v1620
        %2078 = vmatmul.mubr.bf16.gmra.mxu0 %v1588
        %v2079 = vpop.f32.mrf.mxu0
        %v2080 = vadd.f32 %v1919, %v2079
        %v2081 = vpop.f32.mrf.mxu0
        %v2082 = vpop.f32.mrf.mxu0
        %v2083 = vadd.f32 %v1922, %v2082
        %v2084 = vpop.f32.mrf.mxu0
        %2085 = vmatprep.mubr.bf16.mxu0 %v1621
        %2086 = vmatmul.mubr.bf16.gmra.mxu0 %v1589
        %v2087 = vpop.f32.mrf.mxu0
        %v2088 = vadd.f32 %v1927, %v2087
        %v2089 = vpop.f32.mrf.mxu0
        %v2090 = vpop.f32.mrf.mxu0
        %v2091 = vadd.f32 %v1930, %v2090
        %v2092 = vpop.f32.mrf.mxu0
        %2093 = vmatprep.mubr.bf16.mxu0 %v1622
        %2094 = vmatmul.mubr.bf16.gmra.mxu0 %v1590
        %v2095 = vpop.f32.mrf.mxu0
        %v2096 = vadd.f32 %v1935, %v2095
        %v2097 = vpop.f32.mrf.mxu0
        %v2098 = vpop.f32.mrf.mxu0
        %v2099 = vadd.f32 %v1938, %v2098
        %v2100 = vpop.f32.mrf.mxu0
        %2101 = vmatprep.mubr.bf16.mxu0 %v1623
        %2102 = vmatmul.mubr.bf16.gmra.mxu0 %v1591
        %v2103 = vpop.f32.mrf.mxu0
        %v2104 = vadd.f32 %v1943, %v2103
        %v2105 = vpop.f32.mrf.mxu0
        %v2106 = vpop.f32.mrf.mxu0
        %v2107 = vadd.f32 %v1946, %v2106
        %v2108 = vpop.f32.mrf.mxu0
        %2109 = vmatprep.mubr.bf16.mxu0 %v1624
        %2110 = vmatmul.mubr.bf16.gmra.mxu0 %v1592
        %v2111 = vpop.f32.mrf.mxu0
        %v2112 = vadd.f32 %v1951, %v2111
        %v2113 = vpop.f32.mrf.mxu0
        %v2114 = vpop.f32.mrf.mxu0
        %v2115 = vadd.f32 %v1954, %v2114
        %v2116 = vpop.f32.mrf.mxu0
        %2117 = vmatprep.mubr.bf16.mxu0 %v1625
        %2118 = vmatmul.mubr.bf16.gmra.mxu0 %v1593
        %v2119 = vpop.f32.mrf.mxu0
        %v2120 = vadd.f32 %v1959, %v2119
        %v2121 = vpop.f32.mrf.mxu0
        %v2122 = vpop.f32.mrf.mxu0
        %v2123 = vadd.f32 %v1962, %v2122
        %v2124 = vpop.f32.mrf.mxu0
        %2125 = vmatprep.mubr.bf16.mxu0 %v1626
        %2126 = vmatmul.mubr.bf16.gmra.mxu0 %v1594
        %v2127 = vpop.f32.mrf.mxu0
        %v2128 = vadd.f32 %v1967, %v2127
        %v2129 = vpop.f32.mrf.mxu0
        %v2130 = vpop.f32.mrf.mxu0
        %v2131 = vadd.f32 %v1970, %v2130
        %v2132 = vpop.f32.mrf.mxu0
        %2133 = vmatprep.mubr.bf16.mxu0 %v1627
        %2134 = vmatmul.mubr.bf16.gmra.mxu0 %v1595
        %v2135 = vpop.f32.mrf.mxu0
        %v2136 = vadd.f32 %v1975, %v2135
        %v2137 = vpop.f32.mrf.mxu0
        %v2138 = vpop.f32.mrf.mxu0
        %v2139 = vadd.f32 %v1978, %v2138
        %v2140 = vpop.f32.mrf.mxu0
        %2141 = vdwg.mxu0
        %s2142 = scalar_lea.vmem [#allocation11], %s502
        %v2143 = vld [vmem:[%s2142] sm:$0xff]
        %v2144 = vld [vmem:[%s2142 + $0x8] sm:$0xff]
        %v2145 = vld [vmem:[%s2142 + $0x10] sm:$0xff]
        %v2146 = vld [vmem:[%s2142 + $0x18] sm:$0xff]
        %v2147 = vld [vmem:[%s2142 + $0x20] sm:$0xff]
        %v2148 = vld [vmem:[%s2142 + $0x28] sm:$0xff]
        %v2149 = vld [vmem:[%s2142 + $0x30] sm:$0xff]
        %v2150 = vld [vmem:[%s2142 + $0x38] sm:$0xff]
        %v2151 = vld [vmem:[%s2142 + $0x40] sm:$0xff]
        %v2152 = vld [vmem:[%s2142 + $0x48] sm:$0xff]
        %v2153 = vld [vmem:[%s2142 + $0x50] sm:$0xff]
        %v2154 = vld [vmem:[%s2142 + $0x58] sm:$0xff]
        %v2155 = vld [vmem:[%s2142 + $0x60] sm:$0xff]
        %v2156 = vld [vmem:[%s2142 + $0x68] sm:$0xff]
        %v2157 = vld [vmem:[%s2142 + $0x70] sm:$0xff]
        %v2158 = vld [vmem:[%s2142 + $0x78] sm:$0xff]
        %v2159 = vld [vmem:[%s2142 + $0x80] sm:$0xff]
        %v2160 = vld [vmem:[%s2142 + $0x88] sm:$0xff]
        %v2161 = vld [vmem:[%s2142 + $0x90] sm:$0xff]
        %v2162 = vld [vmem:[%s2142 + $0x98] sm:$0xff]
        %v2163 = vld [vmem:[%s2142 + $0xa0] sm:$0xff]
        %v2164 = vld [vmem:[%s2142 + $0xa8] sm:$0xff]
        %v2165 = vld [vmem:[%s2142 + $0xb0] sm:$0xff]
        %v2166 = vld [vmem:[%s2142 + $0xb8] sm:$0xff]
        %v2167 = vld [vmem:[%s2142 + $0xc0] sm:$0xff]
        %v2168 = vld [vmem:[%s2142 + $0xc8] sm:$0xff]
        %v2169 = vld [vmem:[%s2142 + $0xd0] sm:$0xff]
        %v2170 = vld [vmem:[%s2142 + $0xd8] sm:$0xff]
        %v2171 = vld [vmem:[%s2142 + $0xe0] sm:$0xff]
        %v2172 = vld [vmem:[%s2142 + $0xe8] sm:$0xff]
        %v2173 = vld [vmem:[%s2142 + $0xf0] sm:$0xff]
        %v2174 = vld [vmem:[%s2142 + $0xf8] sm:$0xff]
        %v2175 = vadd.f32 %v2143, %v2016
        %v2176 = vadd.f32 %v2144, %v2019
        %v2177 = vadd.f32 %v2145, %v2024
        %v2178 = vadd.f32 %v2146, %v2027
        %v2179 = vadd.f32 %v2147, %v2032
        %v2180 = vadd.f32 %v2148, %v2035
        %v2181 = vadd.f32 %v2149, %v2040
        %v2182 = vadd.f32 %v2150, %v2043
        %v2183 = vadd.f32 %v2151, %v2048
        %v2184 = vadd.f32 %v2152, %v2051
        %v2185 = vadd.f32 %v2153, %v2056
        %v2186 = vadd.f32 %v2154, %v2059
        %v2187 = vadd.f32 %v2155, %v2064
        %v2188 = vadd.f32 %v2156, %v2067
        %v2189 = vadd.f32 %v2157, %v2072
        %v2190 = vadd.f32 %v2158, %v2075
        %v2191 = vadd.f32 %v2159, %v2080
        %v2192 = vadd.f32 %v2160, %v2083
        %v2193 = vadd.f32 %v2161, %v2088
        %v2194 = vadd.f32 %v2162, %v2091
        %v2195 = vadd.f32 %v2163, %v2096
        %v2196 = vadd.f32 %v2164, %v2099
        %v2197 = vadd.f32 %v2165, %v2104
        %v2198 = vadd.f32 %v2166, %v2107
        %v2199 = vadd.f32 %v2167, %v2112
        %v2200 = vadd.f32 %v2168, %v2115
        %v2201 = vadd.f32 %v2169, %v2120
        %v2202 = vadd.f32 %v2170, %v2123
        %v2203 = vadd.f32 %v2171, %v2128
        %v2204 = vadd.f32 %v2172, %v2131
        %v2205 = vadd.f32 %v2173, %v2136
        %v2206 = vadd.f32 %v2174, %v2139
        %2207 = vst [vmem:[%s2142] sm:$0xff] %v2175
        %2208 = vst [vmem:[%s2142 + $0x8] sm:$0xff] %v2176
        %2209 = vst [vmem:[%s2142 + $0x10] sm:$0xff] %v2177
        %2210 = vst [vmem:[%s2142 + $0x18] sm:$0xff] %v2178
        %2211 = vst [vmem:[%s2142 + $0x20] sm:$0xff] %v2179
        %2212 = vst [vmem:[%s2142 + $0x28] sm:$0xff] %v2180
        %2213 = vst [vmem:[%s2142 + $0x30] sm:$0xff] %v2181
        %2214 = vst [vmem:[%s2142 + $0x38] sm:$0xff] %v2182
        %2215 = vst [vmem:[%s2142 + $0x40] sm:$0xff] %v2183
        %2216 = vst [vmem:[%s2142 + $0x48] sm:$0xff] %v2184
        %2217 = vst [vmem:[%s2142 + $0x50] sm:$0xff] %v2185
        %2218 = vst [vmem:[%s2142 + $0x58] sm:$0xff] %v2186
        %2219 = vst [vmem:[%s2142 + $0x60] sm:$0xff] %v2187
        %2220 = vst [vmem:[%s2142 + $0x68] sm:$0xff] %v2188
        %2221 = vst [vmem:[%s2142 + $0x70] sm:$0xff] %v2189
        %2222 = vst [vmem:[%s2142 + $0x78] sm:$0xff] %v2190
        %2223 = vst [vmem:[%s2142 + $0x80] sm:$0xff] %v2191
        %2224 = vst [vmem:[%s2142 + $0x88] sm:$0xff] %v2192
        %2225 = vst [vmem:[%s2142 + $0x90] sm:$0xff] %v2193
        %2226 = vst [vmem:[%s2142 + $0x98] sm:$0xff] %v2194
        %2227 = vst [vmem:[%s2142 + $0xa0] sm:$0xff] %v2195
        %2228 = vst [vmem:[%s2142 + $0xa8] sm:$0xff] %v2196
        %2229 = vst [vmem:[%s2142 + $0xb0] sm:$0xff] %v2197
        %2230 = vst [vmem:[%s2142 + $0xb8] sm:$0xff] %v2198
        %2231 = vst [vmem:[%s2142 + $0xc0] sm:$0xff] %v2199
        %2232 = vst [vmem:[%s2142 + $0xc8] sm:$0xff] %v2200
        %2233 = vst [vmem:[%s2142 + $0xd0] sm:$0xff] %v2201
        %2234 = vst [vmem:[%s2142 + $0xd8] sm:$0xff] %v2202
        %2235 = vst [vmem:[%s2142 + $0xe0] sm:$0xff] %v2203
        %2236 = vst [vmem:[%s2142 + $0xe8] sm:$0xff] %v2204
        %2237 = vst [vmem:[%s2142 + $0xf0] sm:$0xff] %v2205
        %2238 = vst [vmem:[%s2142 + $0xf8] sm:$0xff] %v2206
        // Predicated region
        $region53: #{tpu_custom_call.1} parent=31 // pred_check
          %p2239 = pneg %p129
        $region54: #{tpu_custom_call.1} parent=31 // pred_check_branch
          %2241 = sbr.rel (%p2239) target = $region56
        $region55: #{tpu_custom_call.1} parent=31 // pred_region
          %s2242 = smul.u32 64, %s28
          %s2244 = ssub.s32 8192, 8192
          %2245 = vsyncadd [#allocation6], %s2244
          %s2246 = smul.addr %s2242, 128
          %s2247 = scalar_lea.hbm %s4, %s2246
          %s2248 = sshll.u32 [#allocation10], 4
          %s2249 = int_to_ptr.vmem [resolvable:$true] %s2248
          %2254 = dma.vmem_to_hbm [thread:$0]  %s2249, 8192, %s2247, [#allocation6], 128, 128, 8
        $region56: #{tpu_custom_call.1} parent=31 // pred_fallthru
          _
        // Predicated region
        $region57: #{tpu_custom_call.1} parent=31 // pred_check
          %p2255 = pneg %p150
        $region58: #{tpu_custom_call.1} parent=31 // pred_check_branch
          %2257 = sbr.rel (%p2255) target = $region60
        $region59: #{tpu_custom_call.1} parent=31 // pred_region
          %s2259 = ssub.s32 12288, 12288
          %2260 = vsyncadd [#allocation12], %s2259
          %s2261 = sshll.u32 [#allocation11], 4
          %s2262 = int_to_ptr.vmem [resolvable:$true] %s2261
          %2267 = dma.vmem_to_hbm [thread:$0]  %s2262, 12288, %s5, [#allocation12], 128, 128, 8
        $region60: #{tpu_custom_call.1} parent=31 // pred_fallthru
          _
        // Predicated region
        $region61: #{tpu_custom_call.1} parent=31 // pred_check
          %p2268 = pneg %p129
        $region62: #{tpu_custom_call.1} parent=31 // pred_check_branch
          %2270 = sbr.rel (%p2268) target = $region64
        $region63: #{tpu_custom_call.1} parent=31 // pred_region
          %2271 = dma.done [#allocation6], 8192
        $region64: #{tpu_custom_call.1} parent=31 // pred_fallthru
          _
        // Predicated region
        $region65: #{tpu_custom_call.1} parent=31 // pred_check
          %p2272 = pneg %p150
        $region66: #{tpu_custom_call.1} parent=31 // pred_check_branch
          %2274 = sbr.rel (%p2272) target = $region68
        $region67: #{tpu_custom_call.1} parent=31 // pred_region
          %2275 = dma.done [#allocation12], 12288
        $region68: #{tpu_custom_call.1} parent=31 // pred_fallthru
          _
      $region32: #{tpu_custom_call.1} parent=5 // pred_fallthru
        _
      %p2276 = scmp.le.s32.totalorder 2, %s19
      // Predicated region
      $region69: #{tpu_custom_call.1} parent=5 // pred_check
        %p2277 = pneg %p2276
      $region70: #{tpu_custom_call.1} parent=5 // pred_check_branch
        %2279 = sbr.rel (%p2277) target = $region72
      $region71: #{tpu_custom_call.1} parent=5 // pred_region
        %s2280 = ssub.s32 %s19, 2
      $region72: #{tpu_custom_call.1} parent=5 // pred_fallthru
        _
    $region6: #{tpu_custom_call.1} parent=1 // loop_footer
      %s23 = sadd.s32 1, %s19
    $region7: #{tpu_custom_call.1} parent=1 // loop_footer_branch
      %18 = sbr.rel target = $region3
    $region8: #{tpu_custom_call.1} parent=1 // loop_exit
      _
    %2281 = vsyncpa [#allocation5], 1
    %s2282 = scalar_lea.sflag [#allocation5], 1
    %2283 = vsyncpa %s2282, 1
    %2284 = vsyncpa [#allocation8], 1
    %2285 = vsyncpa [#allocation6], 1
    %s2286 = scalar_lea.sflag [#allocation6], 1
    %2287 = vsyncpa %s2286, 1
    %2288 = vsyncpa [#allocation12], 1

</llo_original>
